<compile_context>
chip_gen: v7x
topology: tpu7x:2x2x1
jax: 0.10.0
libtpu: 0.0.40
codegen_flags: <defaults>
</compile_context>

<pallas_src>
import jax
import jax.numpy as jnp
from jax.experimental import pallas as pl
from jax.experimental.pallas import tpu as pltpu

EPS = 1e-5

# Real (PyTorch) feature sizes and the 128-lane padded hidden/output sizes.
D_IN, D_H1, D_H2, D_OUT = 784, 300, 100, 10
P_H1, P_H2, P_OUT = 384, 128, 128


def _pad_to(x, shape):
    """Zero-pad array x up to `shape` (top-left corner holds the real data)."""
    out = jnp.zeros(shape, x.dtype)
    return out.at[tuple(slice(0, s) for s in x.shape)].set(x)


def make_mlp_kernel(n_batch: int):
    """Fused forward for a (n_batch, 784) bf16 input resident in VMEM."""
    inv_n = 1.0 / float(n_batch)

    def kernel(x_ref,
               w1_ref, g1_ref, be1_ref,
               w2_ref, g2_ref, be2_ref,
               w3_ref, b3_ref,
               o_ref):

        def bn_relu(h_pre, gamma, beta):
            # Training-mode BatchNorm1d with single-pass batch statistics:
            #   mean = E[h], var = E[h^2] - mean^2  (biased variance, f32 math).
            # Padded feature columns are exactly zero pre-BN, so they stay zero
            # (centered=0) and feed zeros into the next matmul.
            s1 = jnp.sum(h_pre, axis=0, keepdims=True)
            s2 = jnp.sum(h_pre * h_pre, axis=0, keepdims=True)
            mean = s1 * inv_n
            var = s2 * inv_n - mean * mean
            h = (h_pre - mean) * jax.lax.rsqrt(var + EPS)
            h = h * gamma + beta
            return jnp.maximum(h, 0.0)

        # Layer 1: Linear(784->300) [bias cancels in train-mode BN] -> BN -> ReLU
        h1 = jnp.dot(x_ref[...], w1_ref[...], preferred_element_type=jnp.float32)
        h1 = bn_relu(h1, g1_ref[...], be1_ref[...])

        # Layer 2: Linear(300->100) [bias cancels in train-mode BN] -> BN -> ReLU
        h2 = jnp.dot(h1.astype(jnp.bfloat16), w2_ref[...],
                     preferred_element_type=jnp.float32)
        h2 = bn_relu(h2, g2_ref[...], be2_ref[...])

        # Layer 3: Linear(100->10) with bias (lane-dense padded to 128 columns)
        out = jnp.dot(h2.astype(jnp.bfloat16), w3_ref[...],
                      preferred_element_type=jnp.float32) + b3_ref[...]
        o_ref[...] = out.astype(o_ref.dtype)

    return kernel


def mlp_forward(x, params):
    """x: (B, 784) float. Returns (B, 10) float32 logits."""
    (w1, g1, be1, w2, g2, be2, w3, b3) = params
    B = x.shape[0]
    assert x.shape[1] == D_IN
    assert B >= 2, "training-mode BatchNorm needs at least 2 rows"

    # Single cast, no padded HBM copy of x: halves x's DMA bytes and VMEM footprint.
    x_bf = x.astype(jnp.bfloat16)

    args = (x_bf, w1, g1, be1, w2, g2, be2, w3, b3)

    def full_spec(a):
        # Default-arg capture avoids the late-binding closure over the loop variable.
        return pl.BlockSpec(a.shape, lambda i, _nd=a.ndim: (0,) * _nd)

    # VMEM budget: double-buffered full-array inputs + f32 activations + headroom,
    # scaled with batch and capped well below v7x's 64 MiB physical VMEM.
    in_bytes = sum(int(a.size) * a.dtype.itemsize for a in args)
    act_bytes = B * (P_H1 + P_H2 + P_OUT) * 4
    vmem_limit = min(max(2 * in_bytes + 4 * act_bytes + (4 << 20), 16 << 20), 40 << 20)

    out = pl.pallas_call(
        make_mlp_kernel(B),
        out_shape=jax.ShapeDtypeStruct((B, P_OUT), jnp.float32),
        grid=(1,),
        in_specs=[full_spec(a) for a in args],
        out_specs=pl.BlockSpec((B, P_OUT), lambda i: (0, 0)),
        compiler_params=pltpu.CompilerParams(
            dimension_semantics=("arbitrary",),
            vmem_limit_bytes=int(vmem_limit),
        ),
    )(*args)
    return out[:, :D_OUT]


def init_params(key):
    """Deterministic init matching net.__init__ shapes; weights stored (in, out) in
    bf16, hidden/output dims zero-padded to 128-multiples. w1 keeps its real 784
    rows (no K padding). b1/b2 are intentionally absent (they cancel exactly in
    training-mode BatchNorm)."""
    keys = jax.random.split(key, 4)

    def linear_w(k, din, dout, pin, pout):
        bound = 1.0 / (din ** 0.5)
        w = jax.random.uniform(k, (din, dout), jnp.float32, -bound, bound)
        return _pad_to(w, (pin, pout)).astype(jnp.bfloat16)

    w1 = linear_w(keys[0], D_IN, D_H1, D_IN, P_H1)     # (784, 384) — no row padding
    w2 = linear_w(keys[1], D_H1, D_H2, P_H1, P_H2)     # (384, 128)
    w3 = linear_w(keys[2], D_H2, D_OUT, P_H2, P_OUT)   # (128, 128)

    bound3 = 1.0 / (D_H2 ** 0.5)
    b3 = _pad_to(
        jax.random.uniform(keys[3], (1, D_OUT), jnp.float32, -bound3, bound3),
        (1, P_OUT))

    # BatchNorm1d defaults: gamma=1, beta=0 (padded feature columns stay 0 regardless).
    g1 = jnp.ones((1, P_H1), jnp.float32)
    be1 = jnp.zeros((1, P_H1), jnp.float32)
    g2 = jnp.ones((1, P_H2), jnp.float32)
    be2 = jnp.zeros((1, P_H2), jnp.float32)

    return (w1, g1, be1, w2, g2, be2, w3, b3)


if __name__ == "__main__":
    key = jax.random.PRNGKey(0)
    k_x, k_p = jax.random.split(key)

    B = 8  # small batch (>1 so BatchNorm batch statistics are well-defined)
    x = jax.random.normal(k_x, (B, D_IN), jnp.float32)
    params = init_params(k_p)

    out = mlp_forward(x, params)
    out = jax.block_until_ready(out)
    assert out.shape == (B, D_OUT) and out.dtype == jnp.float32
    assert bool(jnp.all(jnp.isfinite(out)))
    print("KERNEL_OK")
</pallas_src>

<mosaic_0001>
module attributes {stable_mosaic.version = 11 : i64} {
  func.func @kernel(%arg0: i32, %arg1: memref<8x784xbf16, #tpu.memory_space<vmem>>, %arg2: memref<784x384xbf16, #tpu.memory_space<vmem>>, %arg3: memref<1x384xf32, #tpu.memory_space<vmem>>, %arg4: memref<1x384xf32, #tpu.memory_space<vmem>>, %arg5: memref<384x128xbf16, #tpu.memory_space<vmem>>, %arg6: memref<1x128xf32, #tpu.memory_space<vmem>>, %arg7: memref<1x128xf32, #tpu.memory_space<vmem>>, %arg8: memref<128x128xbf16, #tpu.memory_space<vmem>>, %arg9: memref<1x128xf32, #tpu.memory_space<vmem>>, %arg10: memref<8x128xf32, #tpu.memory_space<vmem>>) attributes {dimension_semantics = [#tpu.dimension_semantics<arbitrary>], iteration_bounds = array<i64: 1>, scalar_prefetch = 0 : i64, scratch_operands = 0 : i64, tpu.core_type = #tpu.core_type<tc>, window_params = [{pipeline_mode = #tpu.pipeline_mode<synchronous>, transform_indices = @transform_0, window_bounds = array<i64: 8, 784>}, {pipeline_mode = #tpu.pipeline_mode<synchronous>, transform_indices = @transform_1, window_bounds = array<i64: 784, 384>}, {pipeline_mode = #tpu.pipeline_mode<synchronous>, transform_indices = @transform_2, window_bounds = array<i64: 1, 384>}, {pipeline_mode = #tpu.pipeline_mode<synchronous>, transform_indices = @transform_3, window_bounds = array<i64: 1, 384>}, {pipeline_mode = #tpu.pipeline_mode<synchronous>, transform_indices = @transform_4, window_bounds = array<i64: 384, 128>}, {pipeline_mode = #tpu.pipeline_mode<synchronous>, transform_indices = @transform_5, window_bounds = array<i64: 1, 128>}, {pipeline_mode = #tpu.pipeline_mode<synchronous>, transform_indices = @transform_6, window_bounds = array<i64: 1, 128>}, {pipeline_mode = #tpu.pipeline_mode<synchronous>, transform_indices = @transform_7, window_bounds = array<i64: 128, 128>}, {pipeline_mode = #tpu.pipeline_mode<synchronous>, transform_indices = @transform_8, window_bounds = array<i64: 1, 128>}, {pipeline_mode = #tpu.pipeline_mode<synchronous>, transform_indices = @transform_9, window_bounds = array<i64: 8, 128>}]} {
    %c0 = arith.constant 0 : index
    %c0_0 = arith.constant 0 : index
    %0 = vector.load %arg1[%c0, %c0_0] : memref<8x784xbf16, #tpu.memory_space<vmem>>, vector<8x784xbf16>
    %c0_1 = arith.constant 0 : index
    %c0_2 = arith.constant 0 : index
    %1 = vector.load %arg2[%c0_1, %c0_2] : memref<784x384xbf16, #tpu.memory_space<vmem>>, vector<784x384xbf16>
    %cst = arith.constant dense<0.000000e+00> : vector<8x384xf32>
    %2 = tpu.matmul %0, %1, %cst {dimension_numbers = #tpu.dot_dimension_numbers<[1], [0], [0], [1], [0, 0, 1, 1], [], []>} : vector<8x784xbf16>, vector<784x384xbf16>, vector<8x384xf32> -> vector<8x384xf32>
    %c0_3 = arith.constant 0 : index
    %c0_4 = arith.constant 0 : index
    %3 = vector.load %arg3[%c0_3, %c0_4] : memref<1x384xf32, #tpu.memory_space<vmem>>, vector<1x384xf32>
    %c0_5 = arith.constant 0 : index
    %c0_6 = arith.constant 0 : index
    %4 = vector.load %arg4[%c0_5, %c0_6] : memref<1x384xf32, #tpu.memory_space<vmem>>, vector<1x384xf32>
    %cst_7 = arith.constant dense<0.000000e+00> : vector<384xf32>
    %5 = vector.multi_reduction <add>, %2, %cst_7 [0] : vector<8x384xf32> to vector<384xf32>
    %6 = vector.shape_cast %5 : vector<384xf32> to vector<1x384xf32>
    %7 = arith.mulf %2, %2 : vector<8x384xf32>
    %cst_8 = arith.constant dense<0.000000e+00> : vector<384xf32>
    %8 = vector.multi_reduction <add>, %7, %cst_8 [0] : vector<8x384xf32> to vector<384xf32>
    %9 = vector.shape_cast %8 : vector<384xf32> to vector<1x384xf32>
    %cst_9 = arith.constant 1.250000e-01 : f32
    %10 = vector.broadcast %cst_9 : f32 to vector<1x384xf32>
    %11 = arith.mulf %6, %10 : vector<1x384xf32>
    %cst_10 = arith.constant 1.250000e-01 : f32
    %12 = vector.broadcast %cst_10 : f32 to vector<1x384xf32>
    %13 = arith.mulf %9, %12 : vector<1x384xf32>
    %14 = arith.mulf %11, %11 : vector<1x384xf32>
    %15 = arith.subf %13, %14 : vector<1x384xf32>
    %16 = vector.broadcast %11 : vector<1x384xf32> to vector<8x384xf32>
    %17 = arith.subf %2, %16 : vector<8x384xf32>
    %cst_11 = arith.constant 9.99999974E-6 : f32
    %18 = vector.broadcast %cst_11 : f32 to vector<1x384xf32>
    %19 = arith.addf %15, %18 : vector<1x384xf32>
    %20 = math.rsqrt %19 : vector<1x384xf32>
    %21 = vector.broadcast %20 : vector<1x384xf32> to vector<8x384xf32>
    %22 = arith.mulf %17, %21 : vector<8x384xf32>
    %23 = vector.broadcast %3 : vector<1x384xf32> to vector<8x384xf32>
    %24 = arith.mulf %22, %23 : vector<8x384xf32>
    %25 = vector.broadcast %4 : vector<1x384xf32> to vector<8x384xf32>
    %26 = arith.addf %24, %25 : vector<8x384xf32>
    %cst_12 = arith.constant 0.000000e+00 : f32
    %27 = vector.broadcast %cst_12 : f32 to vector<8x384xf32>
    %28 = arith.maximumf %26, %27 : vector<8x384xf32>
    %29 = arith.truncf %28 : vector<8x384xf32> to vector<8x384xbf16>
    %c0_13 = arith.constant 0 : index
    %c0_14 = arith.constant 0 : index
    %30 = vector.load %arg5[%c0_13, %c0_14] : memref<384x128xbf16, #tpu.memory_space<vmem>>, vector<384x128xbf16>
    %cst_15 = arith.constant dense<0.000000e+00> : vector<8x128xf32>
    %31 = tpu.matmul %29, %30, %cst_15 {dimension_numbers = #tpu.dot_dimension_numbers<[1], [0], [0], [1], [0, 0, 1, 1], [], []>} : vector<8x384xbf16>, vector<384x128xbf16>, vector<8x128xf32> -> vector<8x128xf32>
    %c0_16 = arith.constant 0 : index
    %c0_17 = arith.constant 0 : index
    %32 = vector.load %arg6[%c0_16, %c0_17] : memref<1x128xf32, #tpu.memory_space<vmem>>, vector<1x128xf32>
    %c0_18 = arith.constant 0 : index
    %c0_19 = arith.constant 0 : index
    %33 = vector.load %arg7[%c0_18, %c0_19] : memref<1x128xf32, #tpu.memory_space<vmem>>, vector<1x128xf32>
    %cst_20 = arith.constant dense<0.000000e+00> : vector<128xf32>
    %34 = vector.multi_reduction <add>, %31, %cst_20 [0] : vector<8x128xf32> to vector<128xf32>
    %35 = vector.shape_cast %34 : vector<128xf32> to vector<1x128xf32>
    %36 = arith.mulf %31, %31 : vector<8x128xf32>
    %cst_21 = arith.constant dense<0.000000e+00> : vector<128xf32>
    %37 = vector.multi_reduction <add>, %36, %cst_21 [0] : vector<8x128xf32> to vector<128xf32>
    %38 = vector.shape_cast %37 : vector<128xf32> to vector<1x128xf32>
    %cst_22 = arith.constant 1.250000e-01 : f32
    %39 = vector.broadcast %cst_22 : f32 to vector<1x128xf32>
    %40 = arith.mulf %35, %39 : vector<1x128xf32>
    %cst_23 = arith.constant 1.250000e-01 : f32
    %41 = vector.broadcast %cst_23 : f32 to vector<1x128xf32>
    %42 = arith.mulf %38, %41 : vector<1x128xf32>
    %43 = arith.mulf %40, %40 : vector<1x128xf32>
    %44 = arith.subf %42, %43 : vector<1x128xf32>
    %45 = vector.broadcast %40 : vector<1x128xf32> to vector<8x128xf32>
    %46 = arith.subf %31, %45 : vector<8x128xf32>
    %cst_24 = arith.constant 9.99999974E-6 : f32
    %47 = vector.broadcast %cst_24 : f32 to vector<1x128xf32>
    %48 = arith.addf %44, %47 : vector<1x128xf32>
    %49 = math.rsqrt %48 : vector<1x128xf32>
    %50 = vector.broadcast %49 : vector<1x128xf32> to vector<8x128xf32>
    %51 = arith.mulf %46, %50 : vector<8x128xf32>
    %52 = vector.broadcast %32 : vector<1x128xf32> to vector<8x128xf32>
    %53 = arith.mulf %51, %52 : vector<8x128xf32>
    %54 = vector.broadcast %33 : vector<1x128xf32> to vector<8x128xf32>
    %55 = arith.addf %53, %54 : vector<8x128xf32>
    %cst_25 = arith.constant 0.000000e+00 : f32
    %56 = vector.broadcast %cst_25 : f32 to vector<8x128xf32>
    %57 = arith.maximumf %55, %56 : vector<8x128xf32>
    %58 = arith.truncf %57 : vector<8x128xf32> to vector<8x128xbf16>
    %c0_26 = arith.constant 0 : index
    %c0_27 = arith.constant 0 : index
    %59 = vector.load %arg8[%c0_26, %c0_27] : memref<128x128xbf16, #tpu.memory_space<vmem>>, vector<128x128xbf16>
    %cst_28 = arith.constant dense<0.000000e+00> : vector<8x128xf32>
    %60 = tpu.matmul %58, %59, %cst_28 {dimension_numbers = #tpu.dot_dimension_numbers<[1], [0], [0], [1], [0, 0, 1, 1], [], []>} : vector<8x128xbf16>, vector<128x128xbf16>, vector<8x128xf32> -> vector<8x128xf32>
    %c0_29 = arith.constant 0 : index
    %c0_30 = arith.constant 0 : index
    %61 = vector.load %arg9[%c0_29, %c0_30] : memref<1x128xf32, #tpu.memory_space<vmem>>, vector<1x128xf32>
    %62 = vector.broadcast %61 : vector<1x128xf32> to vector<8x128xf32>
    %63 = arith.addf %60, %62 : vector<8x128xf32>
    %c0_31 = arith.constant 0 : index
    %c0_32 = arith.constant 0 : index
    %64 = vector.load %arg10[%c0_31, %c0_32] : memref<8x128xf32, #tpu.memory_space<vmem>>, vector<8x128xf32>
    tpu.vector_store %arg10[%c0_31, %c0_32], %63 {strides = array<i32>} : memref<8x128xf32, #tpu.memory_space<vmem>>, vector<8x128xf32>,
    return
  }
  func.func @transform_0(%arg0: i32) -> (i32, i32) {
    %c0_i32 = arith.constant 0 : i32
    %c0_i32_0 = arith.constant 0 : i32
    %c0_i32_1 = arith.constant 0 : i32
    return %c0_i32, %c0_i32_0 : i32, i32
  }
  func.func @transform_1(%arg0: i32) -> (i32, i32) {
    %c0_i32 = arith.constant 0 : i32
    %c0_i32_0 = arith.constant 0 : i32
    %c0_i32_1 = arith.constant 0 : i32
    return %c0_i32, %c0_i32_0 : i32, i32
  }
  func.func @transform_2(%arg0: i32) -> (i32, i32) {
    %c0_i32 = arith.constant 0 : i32
    %c0_i32_0 = arith.constant 0 : i32
    %c0_i32_1 = arith.constant 0 : i32
    return %c0_i32, %c0_i32_0 : i32, i32
  }
  func.func @transform_3(%arg0: i32) -> (i32, i32) {
    %c0_i32 = arith.constant 0 : i32
    %c0_i32_0 = arith.constant 0 : i32
    %c0_i32_1 = arith.constant 0 : i32
    return %c0_i32, %c0_i32_0 : i32, i32
  }
  func.func @transform_4(%arg0: i32) -> (i32, i32) {
    %c0_i32 = arith.constant 0 : i32
    %c0_i32_0 = arith.constant 0 : i32
    %c0_i32_1 = arith.constant 0 : i32
    return %c0_i32, %c0_i32_0 : i32, i32
  }
  func.func @transform_5(%arg0: i32) -> (i32, i32) {
    %c0_i32 = arith.constant 0 : i32
    %c0_i32_0 = arith.constant 0 : i32
    %c0_i32_1 = arith.constant 0 : i32
    return %c0_i32, %c0_i32_0 : i32, i32
  }
  func.func @transform_6(%arg0: i32) -> (i32, i32) {
    %c0_i32 = arith.constant 0 : i32
    %c0_i32_0 = arith.constant 0 : i32
    %c0_i32_1 = arith.constant 0 : i32
    return %c0_i32, %c0_i32_0 : i32, i32
  }
  func.func @transform_7(%arg0: i32) -> (i32, i32) {
    %c0_i32 = arith.constant 0 : i32
    %c0_i32_0 = arith.constant 0 : i32
    %c0_i32_1 = arith.constant 0 : i32
    return %c0_i32, %c0_i32_0 : i32, i32
  }
  func.func @transform_8(%arg0: i32) -> (i32, i32) {
    %c0_i32 = arith.constant 0 : i32
    %c0_i32_0 = arith.constant 0 : i32
    %c0_i32_1 = arith.constant 0 : i32
    return %c0_i32, %c0_i32_0 : i32, i32
  }
  func.func @transform_9(%arg0: i32) -> (i32, i32) {
    %c0_i32 = arith.constant 0 : i32
    %c0_i32_0 = arith.constant 0 : i32
    %c0_i32_1 = arith.constant 0 : i32
    return %c0_i32, %c0_i32_0 : i32, i32
  }
}

</mosaic_0001>

<llo_original>
// kernel: tpu_custom_call.1
$region0: #{tpu_custom_call.1}
  #allocation0 [shape = 'u32[]', space=smem, size = 0x4, offset = 0x4, fixed_abs, tag = 'smem constant byte address 0x4 - core index']
  #allocation1 [shape = 'u32[144,128]{1,0:T(1,128)}', space=vmem, size = 0x12000, scoped, tag = 'internal scratch']
  %s0 = inlined_call_operand.hbm [shape: bf16[8,784], index: 0, kind: input, shape index: {}]
  %s1 = inlined_call_operand.hbm [shape: bf16[784,384], index: 1, kind: input, shape index: {}]
  %s2 = inlined_call_operand.vmem [shape: f32[1,384], index: 2, kind: input, shape index: {}]
  %s3 = inlined_call_operand.vmem [shape: f32[1,384], index: 3, kind: input, shape index: {}]
  %s4 = inlined_call_operand.hbm [shape: bf16[384,128], index: 4, kind: input, shape index: {}]
  %s5 = inlined_call_operand.vmem [shape: f32[1,128], index: 5, kind: input, shape index: {}]
  %s6 = inlined_call_operand.vmem [shape: f32[1,128], index: 6, kind: input, shape index: {}]
  %s7 = inlined_call_operand.hbm [shape: bf16[128,128], index: 7, kind: input, shape index: {}]
  %s8 = inlined_call_operand.vmem [shape: f32[1,128], index: 8, kind: input, shape index: {}]
  %s9 = inlined_call_operand.hbm [shape: f32[8,128], index: 9, kind: output, shape index: {}]
  %s10 = sld [smem:[#allocation0]]
  $region62: #{tpu_custom_call.1} parent=0
    _
  %s12 = ssub.s32 1, %s10
  %s13 = scalar_select 0, %s12, %s10
  $region1: #{tpu_custom_call.1} parent=0
    #allocation2 [shape = 'u8[14336]{0}', space=vmem, size = 0x3800, scoped, tag = 'input window, operand 0, single buffered']
    #allocation3 [shape = 's32[1]{0}', space=sflag, size = 0x4, scoped, tag = 'scoped memory for tpu_custom_call.1']
    #allocation4 [shape = 's32[1]{0}', space=sflag, size = 0x4, scoped, tag = 'scoped memory for tpu_custom_call.1']
    #allocation5 [shape = 'u8[602112]{0}', space=vmem, size = 0x93000, scoped, tag = 'input window, operand 1, single buffered']
    #allocation6 [shape = 's32[1]{0}', space=sflag, size = 0x4, scoped, tag = 'scoped memory for tpu_custom_call.1']
    #allocation7 [shape = 'u8[98304]{0}', space=vmem, size = 0x18000, scoped, tag = 'input window, operand 4, single buffered']
    #allocation8 [shape = 'u8[32768]{0}', space=vmem, size = 0x8000, scoped, tag = 'input window, operand 7, single buffered']
    #allocation9 [shape = 's32[1]{0}', space=sflag, size = 0x4, scoped, tag = 'scoped memory for tpu_custom_call.1']
    #allocation10 [shape = 'u8[4096]{0}', space=vmem, size = 0x1000, scoped, tag = 'output window, operand 0, single buffered']
    %14 = vsyncpa [#allocation3], 0
    %15 = vsyncpa [#allocation6], 0
    %16 = vsyncpa [#allocation9], 0
    %17 = vsyncpa [#allocation4], 0
    // Predicated region
    $region2: #{tpu_custom_call.1} parent=1 // pred_check
      _
    $region3: #{tpu_custom_call.1} parent=1 // pred_check_branch
      %19 = sbr.rel (0) target = $region5
    $region4: #{tpu_custom_call.1} parent=1 // pred_region
      %s21 = ssub.s32 448, 448
      %22 = vsyncadd [#allocation3], %s21
      %s24 = sshll.u32 [#allocation2], 4
      %s25 = int_to_ptr.vmem [resolvable:$true] %s24
      %27 = dma.hbm_to_vmem [thread:$0]  %s0, 448, %s25, [#allocation3]
    $region5: #{tpu_custom_call.1} parent=1 // pred_fallthru
      _
    // Predicated region
    $region6: #{tpu_custom_call.1} parent=1 // pred_check
      _
    $region7: #{tpu_custom_call.1} parent=1 // pred_check_branch
      %29 = sbr.rel (0) target = $region9
    $region8: #{tpu_custom_call.1} parent=1 // pred_region
      %s31 = ssub.s32 18816, 18816
      %32 = vsyncadd [#allocation6], %s31
      %s33 = sshll.u32 [#allocation5], 4
      %s34 = int_to_ptr.vmem [resolvable:$true] %s33
      %39 = dma.hbm_to_vmem [thread:$0]  %s1, 18816, %s34, [#allocation6], 192, 192, 12
    $region9: #{tpu_custom_call.1} parent=1 // pred_fallthru
      _
    // Predicated region
    $region10: #{tpu_custom_call.1} parent=1 // pred_check
      _
    $region11: #{tpu_custom_call.1} parent=1 // pred_check_branch
      %41 = sbr.rel (0) target = $region13
    $region12: #{tpu_custom_call.1} parent=1 // pred_region
      _
    $region13: #{tpu_custom_call.1} parent=1 // pred_fallthru
      _
    // Predicated region
    $region14: #{tpu_custom_call.1} parent=1 // pred_check
      _
    $region15: #{tpu_custom_call.1} parent=1 // pred_check_branch
      %43 = sbr.rel (0) target = $region17
    $region16: #{tpu_custom_call.1} parent=1 // pred_region
      _
    $region17: #{tpu_custom_call.1} parent=1 // pred_fallthru
      _
    // Predicated region
    $region18: #{tpu_custom_call.1} parent=1 // pred_check
      _
    $region19: #{tpu_custom_call.1} parent=1 // pred_check_branch
      %45 = sbr.rel (0) target = $region21
    $region20: #{tpu_custom_call.1} parent=1 // pred_region
      %s47 = ssub.s32 3072, 3072
      %48 = vsyncadd [#allocation6], %s47
      %s49 = sshll.u32 [#allocation7], 4
      %s50 = int_to_ptr.vmem [resolvable:$true] %s49
      %55 = dma.hbm_to_vmem [thread:$0]  %s4, 3072, %s50, [#allocation6], 64, 64, 4
    $region21: #{tpu_custom_call.1} parent=1 // pred_fallthru
      _
    // Predicated region
    $region22: #{tpu_custom_call.1} parent=1 // pred_check
      _
    $region23: #{tpu_custom_call.1} parent=1 // pred_check_branch
      %57 = sbr.rel (0) target = $region25
    $region24: #{tpu_custom_call.1} parent=1 // pred_region
      _
    $region25: #{tpu_custom_call.1} parent=1 // pred_fallthru
      _
    // Predicated region
    $region26: #{tpu_custom_call.1} parent=1 // pred_check
      _
    $region27: #{tpu_custom_call.1} parent=1 // pred_check_branch
      %59 = sbr.rel (0) target = $region29
    $region28: #{tpu_custom_call.1} parent=1 // pred_region
      _
    $region29: #{tpu_custom_call.1} parent=1 // pred_fallthru
      _
    // Predicated region
    $region30: #{tpu_custom_call.1} parent=1 // pred_check
      _
    $region31: #{tpu_custom_call.1} parent=1 // pred_check_branch
      %61 = sbr.rel (0) target = $region33
    $region32: #{tpu_custom_call.1} parent=1 // pred_region
      %s63 = ssub.s32 1024, 1024
      %64 = vsyncadd [#allocation9], %s63
      %s65 = sshll.u32 [#allocation8], 4
      %s66 = int_to_ptr.vmem [resolvable:$true] %s65
      %71 = dma.hbm_to_vmem [thread:$0]  %s7, 1024, %s66, [#allocation9], 64, 64, 4
    $region33: #{tpu_custom_call.1} parent=1 // pred_fallthru
      _
    // Predicated region
    $region34: #{tpu_custom_call.1} parent=1 // pred_check
      _
    $region35: #{tpu_custom_call.1} parent=1 // pred_check_branch
      %73 = sbr.rel (0) target = $region37
    $region36: #{tpu_custom_call.1} parent=1 // pred_region
      _
    $region37: #{tpu_custom_call.1} parent=1 // pred_fallthru
      _
    // Predicated region
    $region38: #{tpu_custom_call.1} parent=1 // pred_check
      _
    $region39: #{tpu_custom_call.1} parent=1 // pred_check_branch
      %75 = sbr.rel (0) target = $region41
    $region40: #{tpu_custom_call.1} parent=1 // pred_region
      %76 = dma.done [#allocation3], 448
    $region41: #{tpu_custom_call.1} parent=1 // pred_fallthru
      _
    // Predicated region
    $region42: #{tpu_custom_call.1} parent=1 // pred_check
      _
    $region43: #{tpu_custom_call.1} parent=1 // pred_check_branch
      %78 = sbr.rel (0) target = $region45
    $region44: #{tpu_custom_call.1} parent=1 // pred_region
      %79 = dma.done [#allocation6], 18816
    $region45: #{tpu_custom_call.1} parent=1 // pred_fallthru
      _
    // Predicated region
    $region46: #{tpu_custom_call.1} parent=1 // pred_check
      _
    $region47: #{tpu_custom_call.1} parent=1 // pred_check_branch
      %81 = sbr.rel (0) target = $region49
    $region48: #{tpu_custom_call.1} parent=1 // pred_region
      %82 = dma.done [#allocation6], 3072
    $region49: #{tpu_custom_call.1} parent=1 // pred_fallthru
      _
    // Predicated region
    $region50: #{tpu_custom_call.1} parent=1 // pred_check
      _
    $region51: #{tpu_custom_call.1} parent=1 // pred_check_branch
      %84 = sbr.rel (0) target = $region53
    $region52: #{tpu_custom_call.1} parent=1 // pred_region
      %85 = dma.done [#allocation9], 1024
    $region53: #{tpu_custom_call.1} parent=1 // pred_fallthru
      _
    %v87 = vld [vmem:[#allocation2] sm:$0xff]
    %v88 = vld [vmem:[#allocation2 + $0x8] sm:$0xff]
    %v89 = vld [vmem:[#allocation2 + $0x10] sm:$0xff]
    %v90 = vld [vmem:[#allocation2 + $0x18] sm:$0xf]
    %v91 = vld [vmem:[#allocation5] sm:$0xff]
    %v92 = vld [vmem:[#allocation5 + $0x8] sm:$0xf]
    %v93 = vld [vmem:[#allocation5 + $0xc] sm:$0xff]
    %v94 = vld [vmem:[#allocation5 + $0x14] sm:$0xf]
    %v95 = vld [vmem:[#allocation5 + $0x18] sm:$0xff]
    %v96 = vld [vmem:[#allocation5 + $0x20] sm:$0xf]
    %v97 = vld [vmem:[#allocation5 + $0x24] sm:$0xff]
    %v98 = vld [vmem:[#allocation5 + $0x2c] sm:$0xf]
    %v99 = vld [vmem:[#allocation5 + $0x30] sm:$0xff]
    %v100 = vld [vmem:[#allocation5 + $0x38] sm:$0xf]
    %v101 = vld [vmem:[#allocation5 + $0x3c] sm:$0xff]
    %v102 = vld [vmem:[#allocation5 + $0x44] sm:$0xf]
    %v103 = vld [vmem:[#allocation5 + $0x48] sm:$0xff]
    %v104 = vld [vmem:[#allocation5 + $0x50] sm:$0xf]
    %v105 = vld [vmem:[#allocation5 + $0x54] sm:$0xff]
    %v106 = vld [vmem:[#allocation5 + $0x5c] sm:$0xf]
    %v107 = vld [vmem:[#allocation5 + $0x60] sm:$0xff]
    %v108 = vld [vmem:[#allocation5 + $0x68] sm:$0xf]
    %v109 = vld [vmem:[#allocation5 + $0x6c] sm:$0xff]
    %v110 = vld [vmem:[#allocation5 + $0x74] sm:$0xf]
    %v111 = vld [vmem:[#allocation5 + $0x78] sm:$0xff]
    %v112 = vld [vmem:[#allocation5 + $0x80] sm:$0xf]
    %v113 = vld [vmem:[#allocation5 + $0x84] sm:$0xff]
    %v114 = vld [vmem:[#allocation5 + $0x8c] sm:$0xf]
    %v115 = vld [vmem:[#allocation5 + $0x90] sm:$0xff]
    %v116 = vld [vmem:[#allocation5 + $0x98] sm:$0xf]
    %v117 = vld [vmem:[#allocation5 + $0x9c] sm:$0xff]
    %v118 = vld [vmem:[#allocation5 + $0xa4] sm:$0xf]
    %v119 = vld [vmem:[#allocation5 + $0xa8] sm:$0xff]
    %v120 = vld [vmem:[#allocation5 + $0xb0] sm:$0xf]
    %v121 = vld [vmem:[#allocation5 + $0xb4] sm:$0xff]
    %v122 = vld [vmem:[#allocation5 + $0xbc] sm:$0xf]
    %v123 = vld [vmem:[#allocation5 + $0xc0] sm:$0xff]
    %v124 = vld [vmem:[#allocation5 + $0xc8] sm:$0xf]
    %v125 = vld [vmem:[#allocation5 + $0xcc] sm:$0xff]
    %v126 = vld [vmem:[#allocation5 + $0xd4] sm:$0xf]
    %v127 = vld [vmem:[#allocation5 + $0xd8] sm:$0xff]
    %v128 = vld [vmem:[#allocation5 + $0xe0] sm:$0xf]
    %v129 = vld [vmem:[#allocation5 + $0xe4] sm:$0xff]
    %v130 = vld [vmem:[#allocation5 + $0xec] sm:$0xf]
    %v131 = vld [vmem:[#allocation5 + $0xf0] sm:$0xff]
    %v132 = vld [vmem:[#allocation5 + $0xf8] sm:$0xf]
    %v133 = vld [vmem:[#allocation5 + $0xfc] sm:$0xff]
    %v134 = vld [vmem:[#allocation5 + $0x104] sm:$0xf]
    %v135 = vld [vmem:[#allocation5 + $0x108] sm:$0xff]
    %v136 = vld [vmem:[#allocation5 + $0x110] sm:$0xf]
    %v137 = vld [vmem:[#allocation5 + $0x114] sm:$0xff]
    %v138 = vld [vmem:[#allocation5 + $0x11c] sm:$0xf]
    %v139 = vld [vmem:[#allocation5 + $0x120] sm:$0xff]
    %v140 = vld [vmem:[#allocation5 + $0x128] sm:$0xf]
    %v141 = vld [vmem:[#allocation5 + $0x12c] sm:$0xff]
    %v142 = vld [vmem:[#allocation5 + $0x134] sm:$0xf]
    %v143 = vld [vmem:[#allocation5 + $0x138] sm:$0xff]
    %v144 = vld [vmem:[#allocation5 + $0x140] sm:$0xf]
    %v145 = vld [vmem:[#allocation5 + $0x144] sm:$0xff]
    %v146 = vld [vmem:[#allocation5 + $0x14c] sm:$0xf]
    %v147 = vld [vmem:[#allocation5 + $0x150] sm:$0xff]
    %v148 = vld [vmem:[#allocation5 + $0x158] sm:$0xf]
    %v149 = vld [vmem:[#allocation5 + $0x15c] sm:$0xff]
    %v150 = vld [vmem:[#allocation5 + $0x164] sm:$0xf]
    %v151 = vld [vmem:[#allocation5 + $0x168] sm:$0xff]
    %v152 = vld [vmem:[#allocation5 + $0x170] sm:$0xf]
    %v153 = vld [vmem:[#allocation5 + $0x174] sm:$0xff]
    %v154 = vld [vmem:[#allocation5 + $0x17c] sm:$0xf]
    %v155 = vld [vmem:[#allocation5 + $0x180] sm:$0xff]
    %v156 = vld [vmem:[#allocation5 + $0x188] sm:$0xf]
    %v157 = vld [vmem:[#allocation5 + $0x18c] sm:$0xff]
    %v158 = vld [vmem:[#allocation5 + $0x194] sm:$0xf]
    %v159 = vld [vmem:[#allocation5 + $0x198] sm:$0xff]
    %v160 = vld [vmem:[#allocation5 + $0x1a0] sm:$0xf]
    %v161 = vld [vmem:[#allocation5 + $0x1a4] sm:$0xff]
    %v162 = vld [vmem:[#allocation5 + $0x1ac] sm:$0xf]
    %v163 = vld [vmem:[#allocation5 + $0x1b0] sm:$0xff]
    %v164 = vld [vmem:[#allocation5 + $0x1b8] sm:$0xf]
    %v165 = vld [vmem:[#allocation5 + $0x1bc] sm:$0xff]
    %v166 = vld [vmem:[#allocation5 + $0x1c4] sm:$0xf]
    %v167 = vld [vmem:[#allocation5 + $0x1c8] sm:$0xff]
    %v168 = vld [vmem:[#allocation5 + $0x1d0] sm:$0xf]
    %v169 = vld [vmem:[#allocation5 + $0x1d4] sm:$0xff]
    %v170 = vld [vmem:[#allocation5 + $0x1dc] sm:$0xf]
    %v171 = vld [vmem:[#allocation5 + $0x1e0] sm:$0xff]
    %v172 = vld [vmem:[#allocation5 + $0x1e8] sm:$0xf]
    %v173 = vld [vmem:[#allocation5 + $0x1ec] sm:$0xff]
    %v174 = vld [vmem:[#allocation5 + $0x1f4] sm:$0xf]
    %v175 = vld [vmem:[#allocation5 + $0x1f8] sm:$0xff]
    %v176 = vld [vmem:[#allocation5 + $0x200] sm:$0xf]
    %v177 = vld [vmem:[#allocation5 + $0x204] sm:$0xff]
    %v178 = vld [vmem:[#allocation5 + $0x20c] sm:$0xf]
    %v179 = vld [vmem:[#allocation5 + $0x210] sm:$0xff]
    %v180 = vld [vmem:[#allocation5 + $0x218] sm:$0xf]
    %v181 = vld [vmem:[#allocation5 + $0x21c] sm:$0xff]
    %v182 = vld [vmem:[#allocation5 + $0x224] sm:$0xf]
    %v183 = vld [vmem:[#allocation5 + $0x228] sm:$0xff]
    %v184 = vld [vmem:[#allocation5 + $0x230] sm:$0xf]
    %v185 = vld [vmem:[#allocation5 + $0x234] sm:$0xff]
    %v186 = vld [vmem:[#allocation5 + $0x23c] sm:$0xf]
    %v187 = vld [vmem:[#allocation5 + $0x240] sm:$0xff]
    %v188 = vld [vmem:[#allocation5 + $0x248] sm:$0xf]
    %v189 = vld [vmem:[#allocation5 + $0x24c] sm:$0xff]
    %v190 = vld [vmem:[#allocation5 + $0x254] sm:$0xf]
    %v191 = vld [vmem:[#allocation5 + $0x258] sm:$0xff]
    %v192 = vld [vmem:[#allocation5 + $0x260] sm:$0xf]
    %v193 = vld [vmem:[#allocation5 + $0x264] sm:$0xff]
    %v194 = vld [vmem:[#allocation5 + $0x26c] sm:$0xf]
    %v195 = vld [vmem:[#allocation5 + $0x270] sm:$0xff]
    %v196 = vld [vmem:[#allocation5 + $0x278] sm:$0xf]
    %v197 = vld [vmem:[#allocation5 + $0x27c] sm:$0xff]
    %v198 = vld [vmem:[#allocation5 + $0x284] sm:$0xf]
    %v199 = vld [vmem:[#allocation5 + $0x288] sm:$0xff]
    %v200 = vld [vmem:[#allocation5 + $0x290] sm:$0xf]
    %v201 = vld [vmem:[#allocation5 + $0x294] sm:$0xff]
    %v202 = vld [vmem:[#allocation5 + $0x29c] sm:$0xf]
    %v203 = vld [vmem:[#allocation5 + $0x2a0] sm:$0xff]
    %v204 = vld [vmem:[#allocation5 + $0x2a8] sm:$0xf]
    %v205 = vld [vmem:[#allocation5 + $0x2ac] sm:$0xff]
    %v206 = vld [vmem:[#allocation5 + $0x2b4] sm:$0xf]
    %v207 = vld [vmem:[#allocation5 + $0x2b8] sm:$0xff]
    %v208 = vld [vmem:[#allocation5 + $0x2c0] sm:$0xf]
    %v209 = vld [vmem:[#allocation5 + $0x2c4] sm:$0xff]
    %v210 = vld [vmem:[#allocation5 + $0x2cc] sm:$0xf]
    %v211 = vld [vmem:[#allocation5 + $0x2d0] sm:$0xff]
    %v212 = vld [vmem:[#allocation5 + $0x2d8] sm:$0xf]
    %v213 = vld [vmem:[#allocation5 + $0x2dc] sm:$0xff]
    %v214 = vld [vmem:[#allocation5 + $0x2e4] sm:$0xf]
    %v215 = vld [vmem:[#allocation5 + $0x2e8] sm:$0xff]
    %v216 = vld [vmem:[#allocation5 + $0x2f0] sm:$0xf]
    %v217 = vld [vmem:[#allocation5 + $0x2f4] sm:$0xff]
    %v218 = vld [vmem:[#allocation5 + $0x2fc] sm:$0xf]
    %v219 = vld [vmem:[#allocation5 + $0x300] sm:$0xff]
    %v220 = vld [vmem:[#allocation5 + $0x308] sm:$0xf]
    %v221 = vld [vmem:[#allocation5 + $0x30c] sm:$0xff]
    %v222 = vld [vmem:[#allocation5 + $0x314] sm:$0xf]
    %v223 = vld [vmem:[#allocation5 + $0x318] sm:$0xff]
    %v224 = vld [vmem:[#allocation5 + $0x320] sm:$0xf]
    %v225 = vld [vmem:[#allocation5 + $0x324] sm:$0xff]
    %v226 = vld [vmem:[#allocation5 + $0x32c] sm:$0xf]
    %v227 = vld [vmem:[#allocation5 + $0x330] sm:$0xff]
    %v228 = vld [vmem:[#allocation5 + $0x338] sm:$0xf]
    %v229 = vld [vmem:[#allocation5 + $0x33c] sm:$0xff]
    %v230 = vld [vmem:[#allocation5 + $0x344] sm:$0xf]
    %v231 = vld [vmem:[#allocation5 + $0x348] sm:$0xff]
    %v232 = vld [vmem:[#allocation5 + $0x350] sm:$0xf]
    %v233 = vld [vmem:[#allocation5 + $0x354] sm:$0xff]
    %v234 = vld [vmem:[#allocation5 + $0x35c] sm:$0xf]
    %v235 = vld [vmem:[#allocation5 + $0x360] sm:$0xff]
    %v236 = vld [vmem:[#allocation5 + $0x368] sm:$0xf]
    %v237 = vld [vmem:[#allocation5 + $0x36c] sm:$0xff]
    %v238 = vld [vmem:[#allocation5 + $0x374] sm:$0xf]
    %v239 = vld [vmem:[#allocation5 + $0x378] sm:$0xff]
    %v240 = vld [vmem:[#allocation5 + $0x380] sm:$0xf]
    %v241 = vld [vmem:[#allocation5 + $0x384] sm:$0xff]
    %v242 = vld [vmem:[#allocation5 + $0x38c] sm:$0xf]
    %v243 = vld [vmem:[#allocation5 + $0x390] sm:$0xff]
    %v244 = vld [vmem:[#allocation5 + $0x398] sm:$0xf]
    %v245 = vld [vmem:[#allocation5 + $0x39c] sm:$0xff]
    %v246 = vld [vmem:[#allocation5 + $0x3a4] sm:$0xf]
    %v247 = vld [vmem:[#allocation5 + $0x3a8] sm:$0xff]
    %v248 = vld [vmem:[#allocation5 + $0x3b0] sm:$0xf]
    %v249 = vld [vmem:[#allocation5 + $0x3b4] sm:$0xff]
    %v250 = vld [vmem:[#allocation5 + $0x3bc] sm:$0xf]
    %v251 = vld [vmem:[#allocation5 + $0x3c0] sm:$0xff]
    %v252 = vld [vmem:[#allocation5 + $0x3c8] sm:$0xf]
    %v253 = vld [vmem:[#allocation5 + $0x3cc] sm:$0xff]
    %v254 = vld [vmem:[#allocation5 + $0x3d4] sm:$0xf]
    %v255 = vld [vmem:[#allocation5 + $0x3d8] sm:$0xff]
    %v256 = vld [vmem:[#allocation5 + $0x3e0] sm:$0xf]
    %v257 = vld [vmem:[#allocation5 + $0x3e4] sm:$0xff]
    %v258 = vld [vmem:[#allocation5 + $0x3ec] sm:$0xf]
    %v259 = vld [vmem:[#allocation5 + $0x3f0] sm:$0xff]
    %v260 = vld [vmem:[#allocation5 + $0x3f8] sm:$0xf]
    %v261 = vld [vmem:[#allocation5 + $0x3fc] sm:$0xff]
    %v262 = vld [vmem:[#allocation5 + $0x404] sm:$0xf]
    %v263 = vld [vmem:[#allocation5 + $0x408] sm:$0xff]
    %v264 = vld [vmem:[#allocation5 + $0x410] sm:$0xf]
    %v265 = vld [vmem:[#allocation5 + $0x414] sm:$0xff]
    %v266 = vld [vmem:[#allocation5 + $0x41c] sm:$0xf]
    %v267 = vld [vmem:[#allocation5 + $0x420] sm:$0xff]
    %v268 = vld [vmem:[#allocation5 + $0x428] sm:$0xf]
    %v269 = vld [vmem:[#allocation5 + $0x42c] sm:$0xff]
    %v270 = vld [vmem:[#allocation5 + $0x434] sm:$0xf]
    %v271 = vld [vmem:[#allocation5 + $0x438] sm:$0xff]
    %v272 = vld [vmem:[#allocation5 + $0x440] sm:$0xf]
    %v273 = vld [vmem:[#allocation5 + $0x444] sm:$0xff]
    %v274 = vld [vmem:[#allocation5 + $0x44c] sm:$0xf]
    %v275 = vld [vmem:[#allocation5 + $0x450] sm:$0xff]
    %v276 = vld [vmem:[#allocation5 + $0x458] sm:$0xf]
    %v277 = vld [vmem:[#allocation5 + $0x45c] sm:$0xff]
    %v278 = vld [vmem:[#allocation5 + $0x464] sm:$0xf]
    %v279 = vld [vmem:[#allocation5 + $0x468] sm:$0xff]
    %v280 = vld [vmem:[#allocation5 + $0x470] sm:$0xf]
    %v281 = vld [vmem:[#allocation5 + $0x474] sm:$0xff]
    %v282 = vld [vmem:[#allocation5 + $0x47c] sm:$0xf]
    %v283 = vld [vmem:[#allocation5 + $0x480] sm:$0xff]
    %v284 = vld [vmem:[#allocation5 + $0x488] sm:$0xf]
    %v285 = vld [vmem:[#allocation5 + $0x48c] sm:$0xff]
    %v286 = vld [vmem:[#allocation5 + $0x494] sm:$0xf]
    %v291 = vunpack.c.l.b16 %v87
    %v292 = vunpack.c.h.b16 %v87
    %v293 = vunpack.c.l.b16 %v88
    %v294 = vunpack.c.h.b16 %v88
    %v295 = vunpack.c.l.b16 %v89
    %v296 = vunpack.c.h.b16 %v89
    %v297 = vunpack.c.l.b16 %v90
    %v298 = vpack.c.b16 %v291, %v291
    %v299 = vpack.c.b16 %v292, %v292
    %v300 = vpack.c.b16 %v293, %v293
    %v301 = vpack.c.b16 %v294, %v294
    %v302 = vpack.c.b16 %v295, %v295
    %v303 = vpack.c.b16 %v296, %v296
    %v304 = vpack.c.b16 %v297, %v297
    %v507 = vunpack.c.l.b16 %v91
    %v508 = vunpack.c.h.b16 %v91
    %v509 = vunpack.c.l.b16 %v92
    %v510 = vunpack.c.l.b16 %v93
    %v511 = vunpack.c.h.b16 %v93
    %v512 = vunpack.c.l.b16 %v94
    %v513 = vunpack.c.l.b16 %v95
    %v514 = vunpack.c.h.b16 %v95
    %v515 = vunpack.c.l.b16 %v96
    %v516 = vunpack.c.l.b16 %v97
    %v517 = vunpack.c.h.b16 %v97
    %v518 = vunpack.c.l.b16 %v98
    %v519 = vunpack.c.l.b16 %v99
    %v520 = vunpack.c.h.b16 %v99
    %v521 = vunpack.c.l.b16 %v100
    %v522 = vunpack.c.l.b16 %v101
    %v523 = vunpack.c.h.b16 %v101
    %v524 = vunpack.c.l.b16 %v102
    %v525 = vunpack.c.l.b16 %v103
    %v526 = vunpack.c.h.b16 %v103
    %v527 = vunpack.c.l.b16 %v104
    %v528 = vunpack.c.l.b16 %v105
    %v529 = vunpack.c.h.b16 %v105
    %v530 = vunpack.c.l.b16 %v106
    %v531 = vunpack.c.l.b16 %v107
    %v532 = vunpack.c.h.b16 %v107
    %v533 = vunpack.c.l.b16 %v108
    %v534 = vunpack.c.l.b16 %v109
    %v535 = vunpack.c.h.b16 %v109
    %v536 = vunpack.c.l.b16 %v110
    %v537 = vunpack.c.l.b16 %v111
    %v538 = vunpack.c.h.b16 %v111
    %v539 = vunpack.c.l.b16 %v112
    %v540 = vunpack.c.l.b16 %v113
    %v541 = vunpack.c.h.b16 %v113
    %v542 = vunpack.c.l.b16 %v114
    %v543 = vunpack.c.l.b16 %v115
    %v544 = vunpack.c.h.b16 %v115
    %v545 = vunpack.c.l.b16 %v116
    %v546 = vunpack.c.l.b16 %v117
    %v547 = vunpack.c.h.b16 %v117
    %v548 = vunpack.c.l.b16 %v118
    %v549 = vunpack.c.l.b16 %v119
    %v550 = vunpack.c.h.b16 %v119
    %v551 = vunpack.c.l.b16 %v120
    %v552 = vunpack.c.l.b16 %v121
    %v553 = vunpack.c.h.b16 %v121
    %v554 = vunpack.c.l.b16 %v122
    %v555 = vunpack.c.l.b16 %v123
    %v556 = vunpack.c.h.b16 %v123
    %v557 = vunpack.c.l.b16 %v124
    %v558 = vunpack.c.l.b16 %v125
    %v559 = vunpack.c.h.b16 %v125
    %v560 = vunpack.c.l.b16 %v126
    %v561 = vunpack.c.l.b16 %v127
    %v562 = vunpack.c.h.b16 %v127
    %v563 = vunpack.c.l.b16 %v128
    %v564 = vunpack.c.l.b16 %v129
    %v565 = vunpack.c.h.b16 %v129
    %v566 = vunpack.c.l.b16 %v130
    %v567 = vunpack.c.l.b16 %v131
    %v568 = vunpack.c.h.b16 %v131
    %v569 = vunpack.c.l.b16 %v132
    %v570 = vunpack.c.l.b16 %v133
    %v571 = vunpack.c.h.b16 %v133
    %v572 = vunpack.c.l.b16 %v134
    %v573 = vunpack.c.l.b16 %v135
    %v574 = vunpack.c.h.b16 %v135
    %v575 = vunpack.c.l.b16 %v136
    %v576 = vunpack.c.l.b16 %v137
    %v577 = vunpack.c.h.b16 %v137
    %v578 = vunpack.c.l.b16 %v138
    %v579 = vunpack.c.l.b16 %v139
    %v580 = vunpack.c.h.b16 %v139
    %v581 = vunpack.c.l.b16 %v140
    %v582 = vunpack.c.l.b16 %v141
    %v583 = vunpack.c.h.b16 %v141
    %v584 = vunpack.c.l.b16 %v142
    %v585 = vunpack.c.l.b16 %v143
    %v586 = vunpack.c.h.b16 %v143
    %v587 = vunpack.c.l.b16 %v144
    %v588 = vunpack.c.l.b16 %v145
    %v589 = vunpack.c.h.b16 %v145
    %v590 = vunpack.c.l.b16 %v146
    %v591 = vunpack.c.l.b16 %v147
    %v592 = vunpack.c.h.b16 %v147
    %v593 = vunpack.c.l.b16 %v148
    %v594 = vunpack.c.l.b16 %v149
    %v595 = vunpack.c.h.b16 %v149
    %v596 = vunpack.c.l.b16 %v150
    %v597 = vunpack.c.l.b16 %v151
    %v598 = vunpack.c.h.b16 %v151
    %v599 = vunpack.c.l.b16 %v152
    %v600 = vunpack.c.l.b16 %v153
    %v601 = vunpack.c.h.b16 %v153
    %v602 = vunpack.c.l.b16 %v154
    %v603 = vunpack.c.l.b16 %v155
    %v604 = vunpack.c.h.b16 %v155
    %v605 = vunpack.c.l.b16 %v156
    %v606 = vunpack.c.l.b16 %v157
    %v607 = vunpack.c.h.b16 %v157
    %v608 = vunpack.c.l.b16 %v158
    %v609 = vunpack.c.l.b16 %v159
    %v610 = vunpack.c.h.b16 %v159
    %v611 = vunpack.c.l.b16 %v160
    %v612 = vunpack.c.l.b16 %v161
    %v613 = vunpack.c.h.b16 %v161
    %v614 = vunpack.c.l.b16 %v162
    %v615 = vunpack.c.l.b16 %v163
    %v616 = vunpack.c.h.b16 %v163
    %v617 = vunpack.c.l.b16 %v164
    %v618 = vunpack.c.l.b16 %v165
    %v619 = vunpack.c.h.b16 %v165
    %v620 = vunpack.c.l.b16 %v166
    %v621 = vunpack.c.l.b16 %v167
    %v622 = vunpack.c.h.b16 %v167
    %v623 = vunpack.c.l.b16 %v168
    %v624 = vunpack.c.l.b16 %v169
    %v625 = vunpack.c.h.b16 %v169
    %v626 = vunpack.c.l.b16 %v170
    %v627 = vunpack.c.l.b16 %v171
    %v628 = vunpack.c.h.b16 %v171
    %v629 = vunpack.c.l.b16 %v172
    %v630 = vunpack.c.l.b16 %v173
    %v631 = vunpack.c.h.b16 %v173
    %v632 = vunpack.c.l.b16 %v174
    %v633 = vunpack.c.l.b16 %v175
    %v634 = vunpack.c.h.b16 %v175
    %v635 = vunpack.c.l.b16 %v176
    %v636 = vunpack.c.l.b16 %v177
    %v637 = vunpack.c.h.b16 %v177
    %v638 = vunpack.c.l.b16 %v178
    %v639 = vunpack.c.l.b16 %v179
    %v640 = vunpack.c.h.b16 %v179
    %v641 = vunpack.c.l.b16 %v180
    %v642 = vunpack.c.l.b16 %v181
    %v643 = vunpack.c.h.b16 %v181
    %v644 = vunpack.c.l.b16 %v182
    %v645 = vunpack.c.l.b16 %v183
    %v646 = vunpack.c.h.b16 %v183
    %v647 = vunpack.c.l.b16 %v184
    %v648 = vunpack.c.l.b16 %v185
    %v649 = vunpack.c.h.b16 %v185
    %v650 = vunpack.c.l.b16 %v186
    %v651 = vunpack.c.l.b16 %v187
    %v652 = vunpack.c.h.b16 %v187
    %v653 = vunpack.c.l.b16 %v188
    %v654 = vunpack.c.l.b16 %v189
    %v655 = vunpack.c.h.b16 %v189
    %v656 = vunpack.c.l.b16 %v190
    %v657 = vunpack.c.l.b16 %v191
    %v658 = vunpack.c.h.b16 %v191
    %v659 = vunpack.c.l.b16 %v192
    %v660 = vunpack.c.l.b16 %v193
    %v661 = vunpack.c.h.b16 %v193
    %v662 = vunpack.c.l.b16 %v194
    %v663 = vunpack.c.l.b16 %v195
    %v664 = vunpack.c.h.b16 %v195
    %v665 = vunpack.c.l.b16 %v196
    %v666 = vunpack.c.l.b16 %v197
    %v667 = vunpack.c.h.b16 %v197
    %v668 = vunpack.c.l.b16 %v198
    %v669 = vunpack.c.l.b16 %v199
    %v670 = vunpack.c.h.b16 %v199
    %v671 = vunpack.c.l.b16 %v200
    %v672 = vunpack.c.l.b16 %v201
    %v673 = vunpack.c.h.b16 %v201
    %v674 = vunpack.c.l.b16 %v202
    %v675 = vunpack.c.l.b16 %v203
    %v676 = vunpack.c.h.b16 %v203
    %v677 = vunpack.c.l.b16 %v204
    %v678 = vunpack.c.l.b16 %v205
    %v679 = vunpack.c.h.b16 %v205
    %v680 = vunpack.c.l.b16 %v206
    %v681 = vunpack.c.l.b16 %v207
    %v682 = vunpack.c.h.b16 %v207
    %v683 = vunpack.c.l.b16 %v208
    %v684 = vunpack.c.l.b16 %v209
    %v685 = vunpack.c.h.b16 %v209
    %v686 = vunpack.c.l.b16 %v210
    %v687 = vunpack.c.l.b16 %v211
    %v688 = vunpack.c.h.b16 %v211
    %v689 = vunpack.c.l.b16 %v212
    %v690 = vunpack.c.l.b16 %v213
    %v691 = vunpack.c.h.b16 %v213
    %v692 = vunpack.c.l.b16 %v214
    %v693 = vunpack.c.l.b16 %v215
    %v694 = vunpack.c.h.b16 %v215
    %v695 = vunpack.c.l.b16 %v216
    %v696 = vunpack.c.l.b16 %v217
    %v697 = vunpack.c.h.b16 %v217
    %v698 = vunpack.c.l.b16 %v218
    %v699 = vunpack.c.l.b16 %v219
    %v700 = vunpack.c.h.b16 %v219
    %v701 = vunpack.c.l.b16 %v220
    %v702 = vunpack.c.l.b16 %v221
    %v703 = vunpack.c.h.b16 %v221
    %v704 = vunpack.c.l.b16 %v222
    %v705 = vunpack.c.l.b16 %v223
    %v706 = vunpack.c.h.b16 %v223
    %v707 = vunpack.c.l.b16 %v224
    %v708 = vunpack.c.l.b16 %v225
    %v709 = vunpack.c.h.b16 %v225
    %v710 = vunpack.c.l.b16 %v226
    %v711 = vunpack.c.l.b16 %v227
    %v712 = vunpack.c.h.b16 %v227
    %v713 = vunpack.c.l.b16 %v228
    %v714 = vunpack.c.l.b16 %v229
    %v715 = vunpack.c.h.b16 %v229
    %v716 = vunpack.c.l.b16 %v230
    %v717 = vunpack.c.l.b16 %v231
    %v718 = vunpack.c.h.b16 %v231
    %v719 = vunpack.c.l.b16 %v232
    %v720 = vunpack.c.l.b16 %v233
    %v721 = vunpack.c.h.b16 %v233
    %v722 = vunpack.c.l.b16 %v234
    %v723 = vunpack.c.l.b16 %v235
    %v724 = vunpack.c.h.b16 %v235
    %v725 = vunpack.c.l.b16 %v236
    %v726 = vunpack.c.l.b16 %v237
    %v727 = vunpack.c.h.b16 %v237
    %v728 = vunpack.c.l.b16 %v238
    %v729 = vunpack.c.l.b16 %v239
    %v730 = vunpack.c.h.b16 %v239
    %v731 = vunpack.c.l.b16 %v240
    %v732 = vunpack.c.l.b16 %v241
    %v733 = vunpack.c.h.b16 %v241
    %v734 = vunpack.c.l.b16 %v242
    %v735 = vunpack.c.l.b16 %v243
    %v736 = vunpack.c.h.b16 %v243
    %v737 = vunpack.c.l.b16 %v244
    %v738 = vunpack.c.l.b16 %v245
    %v739 = vunpack.c.h.b16 %v245
    %v740 = vunpack.c.l.b16 %v246
    %v741 = vunpack.c.l.b16 %v247
    %v742 = vunpack.c.h.b16 %v247
    %v743 = vunpack.c.l.b16 %v248
    %v744 = vunpack.c.l.b16 %v249
    %v745 = vunpack.c.h.b16 %v249
    %v746 = vunpack.c.l.b16 %v250
    %v747 = vunpack.c.l.b16 %v251
    %v748 = vunpack.c.h.b16 %v251
    %v749 = vunpack.c.l.b16 %v252
    %v750 = vunpack.c.l.b16 %v253
    %v751 = vunpack.c.h.b16 %v253
    %v752 = vunpack.c.l.b16 %v254
    %v753 = vunpack.c.l.b16 %v255
    %v754 = vunpack.c.h.b16 %v255
    %v755 = vunpack.c.l.b16 %v256
    %v756 = vunpack.c.l.b16 %v257
    %v757 = vunpack.c.h.b16 %v257
    %v758 = vunpack.c.l.b16 %v258
    %v759 = vunpack.c.l.b16 %v259
    %v760 = vunpack.c.h.b16 %v259
    %v761 = vunpack.c.l.b16 %v260
    %v762 = vunpack.c.l.b16 %v261
    %v763 = vunpack.c.h.b16 %v261
    %v764 = vunpack.c.l.b16 %v262
    %v765 = vunpack.c.l.b16 %v263
    %v766 = vunpack.c.h.b16 %v263
    %v767 = vunpack.c.l.b16 %v264
    %v768 = vunpack.c.l.b16 %v265
    %v769 = vunpack.c.h.b16 %v265
    %v770 = vunpack.c.l.b16 %v266
    %v771 = vunpack.c.l.b16 %v267
    %v772 = vunpack.c.h.b16 %v267
    %v773 = vunpack.c.l.b16 %v268
    %v774 = vunpack.c.l.b16 %v269
    %v775 = vunpack.c.h.b16 %v269
    %v776 = vunpack.c.l.b16 %v270
    %v777 = vunpack.c.l.b16 %v271
    %v778 = vunpack.c.h.b16 %v271
    %v779 = vunpack.c.l.b16 %v272
    %v780 = vunpack.c.l.b16 %v273
    %v781 = vunpack.c.h.b16 %v273
    %v782 = vunpack.c.l.b16 %v274
    %v783 = vunpack.c.l.b16 %v275
    %v784 = vunpack.c.h.b16 %v275
    %v785 = vunpack.c.l.b16 %v276
    %v786 = vunpack.c.l.b16 %v277
    %v787 = vunpack.c.h.b16 %v277
    %v788 = vunpack.c.l.b16 %v278
    %v789 = vunpack.c.l.b16 %v279
    %v790 = vunpack.c.h.b16 %v279
    %v791 = vunpack.c.l.b16 %v280
    %v792 = vunpack.c.l.b16 %v281
    %v793 = vunpack.c.h.b16 %v281
    %v794 = vunpack.c.l.b16 %v282
    %v795 = vunpack.c.l.b16 %v283
    %v796 = vunpack.c.h.b16 %v283
    %v797 = vunpack.c.l.b16 %v284
    %v798 = vunpack.c.l.b16 %v285
    %v799 = vunpack.c.h.b16 %v285
    %v800 = vunpack.c.l.b16 %v286
    %v801 = vpack.c.b16 %v510, %v507
    %v802 = vpack.c.b16 %v511, %v508
    %v803 = vpack.c.b16 %v512, %v509
    %v804 = vpack.c.b16 %v516, %v513
    %v805 = vpack.c.b16 %v517, %v514
    %v806 = vpack.c.b16 %v518, %v515
    %v807 = vpack.c.b16 %v522, %v519
    %v808 = vpack.c.b16 %v523, %v520
    %v809 = vpack.c.b16 %v524, %v521
    %v810 = vpack.c.b16 %v528, %v525
    %v811 = vpack.c.b16 %v529, %v526
    %v812 = vpack.c.b16 %v530, %v527
    %v813 = vpack.c.b16 %v534, %v531
    %v814 = vpack.c.b16 %v535, %v532
    %v815 = vpack.c.b16 %v536, %v533
    %v816 = vpack.c.b16 %v540, %v537
    %v817 = vpack.c.b16 %v541, %v538
    %v818 = vpack.c.b16 %v542, %v539
    %v819 = vpack.c.b16 %v546, %v543
    %v820 = vpack.c.b16 %v547, %v544
    %v821 = vpack.c.b16 %v548, %v545
    %v822 = vpack.c.b16 %v552, %v549
    %v823 = vpack.c.b16 %v553, %v550
    %v824 = vpack.c.b16 %v554, %v551
    %v825 = vpack.c.b16 %v558, %v555
    %v826 = vpack.c.b16 %v559, %v556
    %v827 = vpack.c.b16 %v560, %v557
    %v828 = vpack.c.b16 %v564, %v561
    %v829 = vpack.c.b16 %v565, %v562
    %v830 = vpack.c.b16 %v566, %v563
    %v831 = vpack.c.b16 %v570, %v567
    %v832 = vpack.c.b16 %v571, %v568
    %v833 = vpack.c.b16 %v572, %v569
    %v834 = vpack.c.b16 %v576, %v573
    %v835 = vpack.c.b16 %v577, %v574
    %v836 = vpack.c.b16 %v578, %v575
    %v837 = vpack.c.b16 %v582, %v579
    %v838 = vpack.c.b16 %v583, %v580
    %v839 = vpack.c.b16 %v584, %v581
    %v840 = vpack.c.b16 %v588, %v585
    %v841 = vpack.c.b16 %v589, %v586
    %v842 = vpack.c.b16 %v590, %v587
    %v843 = vpack.c.b16 %v594, %v591
    %v844 = vpack.c.b16 %v595, %v592
    %v845 = vpack.c.b16 %v596, %v593
    %v846 = vpack.c.b16 %v600, %v597
    %v847 = vpack.c.b16 %v601, %v598
    %v848 = vpack.c.b16 %v602, %v599
    %v849 = vpack.c.b16 %v606, %v603
    %v850 = vpack.c.b16 %v607, %v604
    %v851 = vpack.c.b16 %v608, %v605
    %v852 = vpack.c.b16 %v612, %v609
    %v853 = vpack.c.b16 %v613, %v610
    %v854 = vpack.c.b16 %v614, %v611
    %v855 = vpack.c.b16 %v618, %v615
    %v856 = vpack.c.b16 %v619, %v616
    %v857 = vpack.c.b16 %v620, %v617
    %v858 = vpack.c.b16 %v624, %v621
    %v859 = vpack.c.b16 %v625, %v622
    %v860 = vpack.c.b16 %v626, %v623
    %v861 = vpack.c.b16 %v630, %v627
    %v862 = vpack.c.b16 %v631, %v628
    %v863 = vpack.c.b16 %v632, %v629
    %v864 = vpack.c.b16 %v636, %v633
    %v865 = vpack.c.b16 %v637, %v634
    %v866 = vpack.c.b16 %v638, %v635
    %v867 = vpack.c.b16 %v642, %v639
    %v868 = vpack.c.b16 %v643, %v640
    %v869 = vpack.c.b16 %v644, %v641
    %v870 = vpack.c.b16 %v648, %v645
    %v871 = vpack.c.b16 %v649, %v646
    %v872 = vpack.c.b16 %v650, %v647
    %v873 = vpack.c.b16 %v654, %v651
    %v874 = vpack.c.b16 %v655, %v652
    %v875 = vpack.c.b16 %v656, %v653
    %v876 = vpack.c.b16 %v660, %v657
    %v877 = vpack.c.b16 %v661, %v658
    %v878 = vpack.c.b16 %v662, %v659
    %v879 = vpack.c.b16 %v666, %v663
    %v880 = vpack.c.b16 %v667, %v664
    %v881 = vpack.c.b16 %v668, %v665
    %v882 = vpack.c.b16 %v672, %v669
    %v883 = vpack.c.b16 %v673, %v670
    %v884 = vpack.c.b16 %v674, %v671
    %v885 = vpack.c.b16 %v678, %v675
    %v886 = vpack.c.b16 %v679, %v676
    %v887 = vpack.c.b16 %v680, %v677
    %v888 = vpack.c.b16 %v684, %v681
    %v889 = vpack.c.b16 %v685, %v682
    %v890 = vpack.c.b16 %v686, %v683
    %v891 = vpack.c.b16 %v690, %v687
    %v892 = vpack.c.b16 %v691, %v688
    %v893 = vpack.c.b16 %v692, %v689
    %v894 = vpack.c.b16 %v696, %v693
    %v895 = vpack.c.b16 %v697, %v694
    %v896 = vpack.c.b16 %v698, %v695
    %v897 = vpack.c.b16 %v702, %v699
    %v898 = vpack.c.b16 %v703, %v700
    %v899 = vpack.c.b16 %v704, %v701
    %v900 = vpack.c.b16 %v708, %v705
    %v901 = vpack.c.b16 %v709, %v706
    %v902 = vpack.c.b16 %v710, %v707
    %v903 = vpack.c.b16 %v714, %v711
    %v904 = vpack.c.b16 %v715, %v712
    %v905 = vpack.c.b16 %v716, %v713
    %v906 = vpack.c.b16 %v720, %v717
    %v907 = vpack.c.b16 %v721, %v718
    %v908 = vpack.c.b16 %v722, %v719
    %v909 = vpack.c.b16 %v726, %v723
    %v910 = vpack.c.b16 %v727, %v724
    %v911 = vpack.c.b16 %v728, %v725
    %v912 = vpack.c.b16 %v732, %v729
    %v913 = vpack.c.b16 %v733, %v730
    %v914 = vpack.c.b16 %v734, %v731
    %v915 = vpack.c.b16 %v738, %v735
    %v916 = vpack.c.b16 %v739, %v736
    %v917 = vpack.c.b16 %v740, %v737
    %v918 = vpack.c.b16 %v744, %v741
    %v919 = vpack.c.b16 %v745, %v742
    %v920 = vpack.c.b16 %v746, %v743
    %v921 = vpack.c.b16 %v750, %v747
    %v922 = vpack.c.b16 %v751, %v748
    %v923 = vpack.c.b16 %v752, %v749
    %v924 = vpack.c.b16 %v756, %v753
    %v925 = vpack.c.b16 %v757, %v754
    %v926 = vpack.c.b16 %v758, %v755
    %v927 = vpack.c.b16 %v762, %v759
    %v928 = vpack.c.b16 %v763, %v760
    %v929 = vpack.c.b16 %v764, %v761
    %v930 = vpack.c.b16 %v768, %v765
    %v931 = vpack.c.b16 %v769, %v766
    %v932 = vpack.c.b16 %v770, %v767
    %v933 = vpack.c.b16 %v774, %v771
    %v934 = vpack.c.b16 %v775, %v772
    %v935 = vpack.c.b16 %v776, %v773
    %v936 = vpack.c.b16 %v780, %v777
    %v937 = vpack.c.b16 %v781, %v778
    %v938 = vpack.c.b16 %v782, %v779
    %v939 = vpack.c.b16 %v786, %v783
    %v940 = vpack.c.b16 %v787, %v784
    %v941 = vpack.c.b16 %v788, %v785
    %v942 = vpack.c.b16 %v792, %v789
    %v943 = vpack.c.b16 %v793, %v790
    %v944 = vpack.c.b16 %v794, %v791
    %v945 = vpack.c.b16 %v798, %v795
    %v946 = vpack.c.b16 %v799, %v796
    %v947 = vpack.c.b16 %v800, %v797
    %vm1095 = vcmask 130048
    %v1097 = vsel %vm1095, %v304, 0
    %1099 = vmatprep.subr.bf16.mxu0 %v802
    %1100 = vmatpush1.bf16.msra.mxu0 %v801
    %1101 = vmatprep.subr.bf16.mxu0 %v805
    %1102 = vmatpush1.bf16.msra.mxu0 %v804
    %1103 = vmatprep.subr.bf16.mxu0 %v808
    %1104 = vmatpush1.bf16.msra.mxu0 %v807
    %1105 = vmatprep.subr.bf16.mxu0 %v811
    %1106 = vmatpush1.bf16.msra.mxu0 %v810
    %1107 = vmatprep.subr.bf16.mxu0 %v814
    %1108 = vmatpush1.bf16.msra.mxu0 %v813
    %1109 = vmatprep.subr.bf16.mxu0 %v817
    %1110 = vmatpush1.bf16.msra.mxu0 %v816
    %1111 = vmatprep.subr.bf16.mxu0 %v820
    %1112 = vmatpush1.bf16.msra.mxu0 %v819
    %1113 = vmatprep.subr.bf16.mxu0 %v823
    %1114 = vmatpush1.bf16.msra.mxu0 %v822
    %1115 = vmatprep.subr.bf16.mxu0 %v826
    %1116 = vmatpush1.bf16.msra.mxu0 %v825
    %1117 = vmatprep.subr.bf16.mxu0 %v829
    %1118 = vmatpush1.bf16.msra.mxu0 %v828
    %1119 = vmatprep.subr.bf16.mxu0 %v832
    %1120 = vmatpush1.bf16.msra.mxu0 %v831
    %1121 = vmatprep.subr.bf16.mxu0 %v835
    %1122 = vmatpush1.bf16.msra.mxu0 %v834
    %1123 = vmatprep.subr.bf16.mxu0 %v838
    %1124 = vmatpush1.bf16.msra.mxu0 %v837
    %1125 = vmatprep.subr.bf16.mxu0 %v841
    %1126 = vmatpush1.bf16.msra.mxu0 %v840
    %1127 = vmatprep.subr.bf16.mxu0 %v844
    %1128 = vmatpush1.bf16.msra.mxu0 %v843
    %1129 = vmatprep.subr.bf16.mxu0 %v847
    %1130 = vmatpush1.bf16.msra.mxu0 %v846
    %1131 = vmatprep.mubr.bf16.mxu0 %v299
    %1132 = vmatmul.mubr.bf16.gmra.mrb[0].mxu0 %v298
    %v1133 = vpop.f32.mrb[0].mxu0
    %v1134 = vadd.f32 0.0, %v1133
    %v1135 = vpop.f32.mrb[0].mxu0
    %v1136 = vadd.f32 0.0, %v1135
    %v1137 = vpop.f32.mrb[0].mxu0
    %v1138 = vpop.f32.mrb[0].mxu0
    %1139 = vdwg.mxu0
    %1140 = vmatprep.subr.bf16.mxu0 %v850
    %1141 = vmatpush1.bf16.msra.mxu0 %v849
    %1142 = vmatprep.subr.bf16.mxu0 %v853
    %1143 = vmatpush1.bf16.msra.mxu0 %v852
    %1144 = vmatprep.subr.bf16.mxu0 %v856
    %1145 = vmatpush1.bf16.msra.mxu0 %v855
    %1146 = vmatprep.subr.bf16.mxu0 %v859
    %1147 = vmatpush1.bf16.msra.mxu0 %v858
    %1148 = vmatprep.subr.bf16.mxu0 %v862
    %1149 = vmatpush1.bf16.msra.mxu0 %v861
    %1150 = vmatprep.subr.bf16.mxu0 %v865
    %1151 = vmatpush1.bf16.msra.mxu0 %v864
    %1152 = vmatprep.subr.bf16.mxu0 %v868
    %1153 = vmatpush1.bf16.msra.mxu0 %v867
    %1154 = vmatprep.subr.bf16.mxu0 %v871
    %1155 = vmatpush1.bf16.msra.mxu0 %v870
    %1156 = vmatprep.subr.bf16.mxu0 %v874
    %1157 = vmatpush1.bf16.msra.mxu0 %v873
    %1158 = vmatprep.subr.bf16.mxu0 %v877
    %1159 = vmatpush1.bf16.msra.mxu0 %v876
    %1160 = vmatprep.subr.bf16.mxu0 %v880
    %1161 = vmatpush1.bf16.msra.mxu0 %v879
    %1162 = vmatprep.subr.bf16.mxu0 %v883
    %1163 = vmatpush1.bf16.msra.mxu0 %v882
    %1164 = vmatprep.subr.bf16.mxu0 %v886
    %1165 = vmatpush1.bf16.msra.mxu0 %v885
    %1166 = vmatprep.subr.bf16.mxu0 %v889
    %1167 = vmatpush1.bf16.msra.mxu0 %v888
    %1168 = vmatprep.subr.bf16.mxu0 %v892
    %1169 = vmatpush1.bf16.msra.mxu0 %v891
    %1170 = vmatprep.subr.bf16.mxu0 %v895
    %1171 = vmatpush1.bf16.msra.mxu0 %v894
    %1172 = vmatprep.mubr.bf16.mxu0 %v301
    %1173 = vmatmul.mubr.bf16.gmra.mrb[0].mxu0 %v300
    %v1174 = vpop.f32.mrb[0].mxu0
    %v1175 = vadd.f32 %v1134, %v1174
    %v1176 = vpop.f32.mrb[0].mxu0
    %v1177 = vadd.f32 %v1136, %v1176
    %v1178 = vpop.f32.mrb[0].mxu0
    %v1179 = vpop.f32.mrb[0].mxu0
    %1180 = vdwg.mxu0
    %1181 = vmatprep.subr.bf16.mxu0 %v898
    %1182 = vmatpush1.bf16.msra.mxu0 %v897
    %1183 = vmatprep.subr.bf16.mxu0 %v901
    %1184 = vmatpush1.bf16.msra.mxu0 %v900
    %1185 = vmatprep.subr.bf16.mxu0 %v904
    %1186 = vmatpush1.bf16.msra.mxu0 %v903
    %1187 = vmatprep.subr.bf16.mxu0 %v907
    %1188 = vmatpush1.bf16.msra.mxu0 %v906
    %1189 = vmatprep.subr.bf16.mxu0 %v910
    %1190 = vmatpush1.bf16.msra.mxu0 %v909
    %1191 = vmatprep.subr.bf16.mxu0 %v913
    %1192 = vmatpush1.bf16.msra.mxu0 %v912
    %1193 = vmatprep.subr.bf16.mxu0 %v916
    %1194 = vmatpush1.bf16.msra.mxu0 %v915
    %1195 = vmatprep.subr.bf16.mxu0 %v919
    %1196 = vmatpush1.bf16.msra.mxu0 %v918
    %1197 = vmatprep.subr.bf16.mxu0 %v922
    %1198 = vmatpush1.bf16.msra.mxu0 %v921
    %1199 = vmatprep.subr.bf16.mxu0 %v925
    %1200 = vmatpush1.bf16.msra.mxu0 %v924
    %1201 = vmatprep.subr.bf16.mxu0 %v928
    %1202 = vmatpush1.bf16.msra.mxu0 %v927
    %1203 = vmatprep.subr.bf16.mxu0 %v931
    %1204 = vmatpush1.bf16.msra.mxu0 %v930
    %1205 = vmatprep.subr.bf16.mxu0 %v934
    %1206 = vmatpush1.bf16.msra.mxu0 %v933
    %1207 = vmatprep.subr.bf16.mxu0 %v937
    %1208 = vmatpush1.bf16.msra.mxu0 %v936
    %1209 = vmatprep.subr.bf16.mxu0 %v940
    %1210 = vmatpush1.bf16.msra.mxu0 %v939
    %1211 = vmatprep.subr.bf16.mxu0 %v943
    %1212 = vmatpush1.bf16.msra.mxu0 %v942
    %1213 = vmatprep.mubr.bf16.mxu0 %v303
    %1214 = vmatmul.mubr.bf16.gmra.mrb[0].mxu0 %v302
    %v1215 = vpop.f32.mrb[0].mxu0
    %v1216 = vadd.f32 %v1175, %v1215
    %v1217 = vpop.f32.mrb[0].mxu0
    %v1218 = vadd.f32 %v1177, %v1217
    %v1219 = vpop.f32.mrb[0].mxu0
    %v1220 = vpop.f32.mrb[0].mxu0
    %1221 = vdwg.mxu0
    %1222 = vmatprep.subr.bf16.mxu0 %v946
    %1223 = vmatpush1.bf16.msra.mxu0 %v945
    %1224 = vmatprep.subr.bf16.mxu0 0
    %1225 = vmatpush1.bf16.msra.mxu0 0
    %1226 = vmatprep.subr.bf16.mxu0 0
    %1227 = vmatpush1.bf16.msra.mxu0 0
    %1228 = vmatprep.subr.bf16.mxu0 0
    %1229 = vmatpush1.bf16.msra.mxu0 0
    %1230 = vmatprep.subr.bf16.mxu0 0
    %1231 = vmatpush1.bf16.msra.mxu0 0
    %1232 = vmatprep.subr.bf16.mxu0 0
    %1233 = vmatpush1.bf16.msra.mxu0 0
    %1234 = vmatprep.subr.bf16.mxu0 0
    %1235 = vmatpush1.bf16.msra.mxu0 0
    %1236 = vmatprep.subr.bf16.mxu0 0
    %1237 = vmatpush1.bf16.msra.mxu0 0
    %1238 = vmatprep.subr.bf16.mxu0 0
    %1239 = vmatpush1.bf16.msra.mxu0 0
    %1240 = vmatprep.subr.bf16.mxu0 0
    %1241 = vmatpush1.bf16.msra.mxu0 0
    %1242 = vmatprep.subr.bf16.mxu0 0
    %1243 = vmatpush1.bf16.msra.mxu0 0
    %1244 = vmatprep.subr.bf16.mxu0 0
    %1245 = vmatpush1.bf16.msra.mxu0 0
    %1246 = vmatprep.subr.bf16.mxu0 0
    %1247 = vmatpush1.bf16.msra.mxu0 0
    %1248 = vmatprep.subr.bf16.mxu0 0
    %1249 = vmatpush1.bf16.msra.mxu0 0
    %1250 = vmatprep.subr.bf16.mxu0 0
    %1251 = vmatpush1.bf16.msra.mxu0 0
    %1252 = vmatprep.subr.bf16.mxu0 0
    %1253 = vmatpush1.bf16.msra.mxu0 0
    %1254 = vmatprep.mubr.bf16.mxu0 0
    %1255 = vmatmul.mubr.bf16.gmra.mrb[0].mxu0 %v1097
    %v1256 = vpop.f32.mrb[0].mxu0
    %v1257 = vadd.f32 %v1216, %v1256
    %v1258 = vpop.f32.mrb[0].mxu0
    %v1259 = vadd.f32 %v1218, %v1258
    %v1260 = vpop.f32.mrb[0].mxu0
    %v1261 = vpop.f32.mrb[0].mxu0
    %1262 = vdwg.mxu0
    %1263 = vmatprep.subr.bf16.mxu0 0
    %1264 = vmatpush1.bf16.msra.mxu0 %v803
    %1265 = vmatprep.subr.bf16.mxu0 0
    %1266 = vmatpush1.bf16.msra.mxu0 %v806
    %1267 = vmatprep.subr.bf16.mxu0 0
    %1268 = vmatpush1.bf16.msra.mxu0 %v809
    %1269 = vmatprep.subr.bf16.mxu0 0
    %1270 = vmatpush1.bf16.msra.mxu0 %v812
    %1271 = vmatprep.subr.bf16.mxu0 0
    %1272 = vmatpush1.bf16.msra.mxu0 %v815
    %1273 = vmatprep.subr.bf16.mxu0 0
    %1274 = vmatpush1.bf16.msra.mxu0 %v818
    %1275 = vmatprep.subr.bf16.mxu0 0
    %1276 = vmatpush1.bf16.msra.mxu0 %v821
    %1277 = vmatprep.subr.bf16.mxu0 0
    %1278 = vmatpush1.bf16.msra.mxu0 %v824
    %1279 = vmatprep.subr.bf16.mxu0 0
    %1280 = vmatpush1.bf16.msra.mxu0 %v827
    %1281 = vmatprep.subr.bf16.mxu0 0
    %1282 = vmatpush1.bf16.msra.mxu0 %v830
    %1283 = vmatprep.subr.bf16.mxu0 0
    %1284 = vmatpush1.bf16.msra.mxu0 %v833
    %1285 = vmatprep.subr.bf16.mxu0 0
    %1286 = vmatpush1.bf16.msra.mxu0 %v836
    %1287 = vmatprep.subr.bf16.mxu0 0
    %1288 = vmatpush1.bf16.msra.mxu0 %v839
    %1289 = vmatprep.subr.bf16.mxu0 0
    %1290 = vmatpush1.bf16.msra.mxu0 %v842
    %1291 = vmatprep.subr.bf16.mxu0 0
    %1292 = vmatpush1.bf16.msra.mxu0 %v845
    %1293 = vmatprep.subr.bf16.mxu0 0
    %1294 = vmatpush1.bf16.msra.mxu0 %v848
    %1295 = vmatprep.mubr.bf16.mxu0 %v299
    %1296 = vmatmul.mubr.bf16.gmra.mrb[0].mxu0 %v298
    %v1297 = vpop.f32.mrb[0].mxu0
    %v1298 = vadd.f32 0.0, %v1297
    %v1299 = vpop.f32.mrb[0].mxu0
    %v1300 = vpop.f32.mrb[0].mxu0
    %v1301 = vpop.f32.mrb[0].mxu0
    %1302 = vdwg.mxu0
    %1303 = vmatprep.subr.bf16.mxu0 0
    %1304 = vmatpush1.bf16.msra.mxu0 %v851
    %1305 = vmatprep.subr.bf16.mxu0 0
    %1306 = vmatpush1.bf16.msra.mxu0 %v854
    %1307 = vmatprep.subr.bf16.mxu0 0
    %1308 = vmatpush1.bf16.msra.mxu0 %v857
    %1309 = vmatprep.subr.bf16.mxu0 0
    %1310 = vmatpush1.bf16.msra.mxu0 %v860
    %1311 = vmatprep.subr.bf16.mxu0 0
    %1312 = vmatpush1.bf16.msra.mxu0 %v863
    %1313 = vmatprep.subr.bf16.mxu0 0
    %1314 = vmatpush1.bf16.msra.mxu0 %v866
    %1315 = vmatprep.subr.bf16.mxu0 0
    %1316 = vmatpush1.bf16.msra.mxu0 %v869
    %1317 = vmatprep.subr.bf16.mxu0 0
    %1318 = vmatpush1.bf16.msra.mxu0 %v872
    %1319 = vmatprep.subr.bf16.mxu0 0
    %1320 = vmatpush1.bf16.msra.mxu0 %v875
    %1321 = vmatprep.subr.bf16.mxu0 0
    %1322 = vmatpush1.bf16.msra.mxu0 %v878
    %1323 = vmatprep.subr.bf16.mxu0 0
    %1324 = vmatpush1.bf16.msra.mxu0 %v881
    %1325 = vmatprep.subr.bf16.mxu0 0
    %1326 = vmatpush1.bf16.msra.mxu0 %v884
    %1327 = vmatprep.subr.bf16.mxu0 0
    %1328 = vmatpush1.bf16.msra.mxu0 %v887
    %1329 = vmatprep.subr.bf16.mxu0 0
    %1330 = vmatpush1.bf16.msra.mxu0 %v890
    %1331 = vmatprep.subr.bf16.mxu0 0
    %1332 = vmatpush1.bf16.msra.mxu0 %v893
    %1333 = vmatprep.subr.bf16.mxu0 0
    %1334 = vmatpush1.bf16.msra.mxu0 %v896
    %1335 = vmatprep.mubr.bf16.mxu0 %v301
    %1336 = vmatmul.mubr.bf16.gmra.mrb[0].mxu0 %v300
    %v1337 = vpop.f32.mrb[0].mxu0
    %v1338 = vadd.f32 %v1298, %v1337
    %v1339 = vpop.f32.mrb[0].mxu0
    %v1340 = vpop.f32.mrb[0].mxu0
    %v1341 = vpop.f32.mrb[0].mxu0
    %1342 = vdwg.mxu0
    %1343 = vmatprep.subr.bf16.mxu0 0
    %1344 = vmatpush1.bf16.msra.mxu0 %v899
    %1345 = vmatprep.subr.bf16.mxu0 0
    %1346 = vmatpush1.bf16.msra.mxu0 %v902
    %1347 = vmatprep.subr.bf16.mxu0 0
    %1348 = vmatpush1.bf16.msra.mxu0 %v905
    %1349 = vmatprep.subr.bf16.mxu0 0
    %1350 = vmatpush1.bf16.msra.mxu0 %v908
    %1351 = vmatprep.subr.bf16.mxu0 0
    %1352 = vmatpush1.bf16.msra.mxu0 %v911
    %1353 = vmatprep.subr.bf16.mxu0 0
    %1354 = vmatpush1.bf16.msra.mxu0 %v914
    %1355 = vmatprep.subr.bf16.mxu0 0
    %1356 = vmatpush1.bf16.msra.mxu0 %v917
    %1357 = vmatprep.subr.bf16.mxu0 0
    %1358 = vmatpush1.bf16.msra.mxu0 %v920
    %1359 = vmatprep.subr.bf16.mxu0 0
    %1360 = vmatpush1.bf16.msra.mxu0 %v923
    %1361 = vmatprep.subr.bf16.mxu0 0
    %1362 = vmatpush1.bf16.msra.mxu0 %v926
    %1363 = vmatprep.subr.bf16.mxu0 0
    %1364 = vmatpush1.bf16.msra.mxu0 %v929
    %1365 = vmatprep.subr.bf16.mxu0 0
    %1366 = vmatpush1.bf16.msra.mxu0 %v932
    %1367 = vmatprep.subr.bf16.mxu0 0
    %1368 = vmatpush1.bf16.msra.mxu0 %v935
    %1369 = vmatprep.subr.bf16.mxu0 0
    %1370 = vmatpush1.bf16.msra.mxu0 %v938
    %1371 = vmatprep.subr.bf16.mxu0 0
    %1372 = vmatpush1.bf16.msra.mxu0 %v941
    %1373 = vmatprep.subr.bf16.mxu0 0
    %1374 = vmatpush1.bf16.msra.mxu0 %v944
    %1375 = vmatprep.mubr.bf16.mxu0 %v303
    %1376 = vmatmul.mubr.bf16.gmra.mrb[0].mxu0 %v302
    %v1377 = vpop.f32.mrb[0].mxu0
    %v1378 = vadd.f32 %v1338, %v1377
    %v1379 = vpop.f32.mrb[0].mxu0
    %v1380 = vpop.f32.mrb[0].mxu0
    %v1381 = vpop.f32.mrb[0].mxu0
    %1382 = vdwg.mxu0
    %1383 = vmatprep.subr.bf16.mxu0 0
    %1384 = vmatpush1.bf16.msra.mxu0 %v947
    %1385 = vmatprep.subr.bf16.mxu0 0
    %1386 = vmatpush1.bf16.msra.mxu0 0
    %1387 = vmatprep.subr.bf16.mxu0 0
    %1388 = vmatpush1.bf16.msra.mxu0 0
    %1389 = vmatprep.subr.bf16.mxu0 0
    %1390 = vmatpush1.bf16.msra.mxu0 0
    %1391 = vmatprep.subr.bf16.mxu0 0
    %1392 = vmatpush1.bf16.msra.mxu0 0
    %1393 = vmatprep.subr.bf16.mxu0 0
    %1394 = vmatpush1.bf16.msra.mxu0 0
    %1395 = vmatprep.subr.bf16.mxu0 0
    %1396 = vmatpush1.bf16.msra.mxu0 0
    %1397 = vmatprep.subr.bf16.mxu0 0
    %1398 = vmatpush1.bf16.msra.mxu0 0
    %1399 = vmatprep.subr.bf16.mxu0 0
    %1400 = vmatpush1.bf16.msra.mxu0 0
    %1401 = vmatprep.subr.bf16.mxu0 0
    %1402 = vmatpush1.bf16.msra.mxu0 0
    %1403 = vmatprep.subr.bf16.mxu0 0
    %1404 = vmatpush1.bf16.msra.mxu0 0
    %1405 = vmatprep.subr.bf16.mxu0 0
    %1406 = vmatpush1.bf16.msra.mxu0 0
    %1407 = vmatprep.subr.bf16.mxu0 0
    %1408 = vmatpush1.bf16.msra.mxu0 0
    %1409 = vmatprep.subr.bf16.mxu0 0
    %1410 = vmatpush1.bf16.msra.mxu0 0
    %1411 = vmatprep.subr.bf16.mxu0 0
    %1412 = vmatpush1.bf16.msra.mxu0 0
    %1413 = vmatprep.subr.bf16.mxu0 0
    %1414 = vmatpush1.bf16.msra.mxu0 0
    %1415 = vmatprep.mubr.bf16.mxu0 0
    %1416 = vmatmul.mubr.bf16.gmra.mrb[0].mxu0 %v1097
    %v1417 = vpop.f32.mrb[0].mxu0
    %v1418 = vadd.f32 %v1378, %v1417
    %v1419 = vpop.f32.mrb[0].mxu0
    %v1420 = vpop.f32.mrb[0].mxu0
    %v1421 = vpop.f32.mrb[0].mxu0
    %1422 = vdwg.mxu0
    %v1423 = vld [vmem:[%s2] sm:$0x7]
    %v1424 = vld [vmem:[%s3] sm:$0x7]
    %v1425 = vrot.slane %v1257, 4
    %v1426 = vadd.f32 %v1257, %v1425
    %v1427 = vrot.slane %v1426, 2
    %v1428 = vadd.f32 %v1426, %v1427
    %v1429 = vrot.slane %v1428, 1
    %v1430 = vadd.f32 %v1428, %v1429
    %v1431 = vrot.slane %v1259, 4
    %v1432 = vadd.f32 %v1259, %v1431
    %v1433 = vrot.slane %v1432, 2
    %v1434 = vadd.f32 %v1432, %v1433
    %v1435 = vrot.slane %v1434, 1
    %v1436 = vadd.f32 %v1434, %v1435
    %v1437 = vrot.slane %v1418, 4
    %v1438 = vadd.f32 %v1418, %v1437
    %v1439 = vrot.slane %v1438, 2
    %v1440 = vadd.f32 %v1438, %v1439
    %v1441 = vrot.slane %v1440, 1
    %v1442 = vadd.f32 %v1440, %v1441
    %v1443 = vmul.f32 %v1257, %v1257
    %v1444 = vmul.f32 %v1259, %v1259
    %v1445 = vmul.f32 %v1418, %v1418
    %v1446 = vrot.slane %v1443, 4
    %v1447 = vadd.f32 %v1443, %v1446
    %v1448 = vrot.slane %v1447, 2
    %v1449 = vadd.f32 %v1447, %v1448
    %v1450 = vrot.slane %v1449, 1
    %v1451 = vadd.f32 %v1449, %v1450
    %v1452 = vrot.slane %v1444, 4
    %v1453 = vadd.f32 %v1444, %v1452
    %v1454 = vrot.slane %v1453, 2
    %v1455 = vadd.f32 %v1453, %v1454
    %v1456 = vrot.slane %v1455, 1
    %v1457 = vadd.f32 %v1455, %v1456
    %v1458 = vrot.slane %v1445, 4
    %v1459 = vadd.f32 %v1445, %v1458
    %v1460 = vrot.slane %v1459, 2
    %v1461 = vadd.f32 %v1459, %v1460
    %v1462 = vrot.slane %v1461, 1
    %v1463 = vadd.f32 %v1461, %v1462
    %v1464 = vmul.f32 %v1430, 0.125
    %v1465 = vmul.f32 %v1436, 0.125
    %v1466 = vmul.f32 %v1442, 0.125
    %v1467 = vmul.f32 %v1451, 0.125
    %v1468 = vmul.f32 %v1457, 0.125
    %v1469 = vmul.f32 %v1463, 0.125
    %v1470 = vmul.f32 %v1464, %v1464
    %v1471 = vmul.f32 %v1465, %v1465
    %v1472 = vmul.f32 %v1466, %v1466
    %v1473 = vsub.f32 %v1467, %v1470
    %v1474 = vsub.f32 %v1468, %v1471
    %v1475 = vsub.f32 %v1469, %v1472
    %v1476 = vsub.f32 %v1257, %v1464
    %v1477 = vsub.f32 %v1259, %v1465
    %v1478 = vsub.f32 %v1418, %v1466
    %v1479 = vadd.f32 %v1473, 1e-05
    %v1480 = vadd.f32 %v1474, 1e-05
    %v1481 = vadd.f32 %v1475, 1e-05
    %v1482 = vrsqrt.pop %v1479
    %v1483 = vrsqrt.pop %v1480
    %v1484 = vrsqrt.pop %v1481
    %v1485 = vmul.f32 %v1476, %v1482
    %v1486 = vmul.f32 %v1477, %v1483
    %v1487 = vmul.f32 %v1478, %v1484
    %v1489 = vlaneseq
    %v1490 = vshrl.u32 %v1489, 7
    %v1491 = vsub.s32 0, %v1490
    %v1492 = vrot.slane %v1423, %v1491
    %v1493 = vlaneseq
    %v1494 = vshrl.u32 %v1493, 7
    %v1495 = vsub.s32 1, %v1494
    %v1496 = vrot.slane %v1423, %v1495
    %v1497 = vlaneseq
    %v1498 = vshrl.u32 %v1497, 7
    %v1499 = vsub.s32 2, %v1498
    %v1500 = vrot.slane %v1423, %v1499
    %v1504 = vmul.f32 %v1485, %v1492
    %v1505 = vmul.f32 %v1486, %v1496
    %v1506 = vmul.f32 %v1487, %v1500
    %v1508 = vlaneseq
    %v1509 = vshrl.u32 %v1508, 7
    %v1510 = vsub.s32 0, %v1509
    %v1511 = vrot.slane %v1424, %v1510
    %v1512 = vlaneseq
    %v1513 = vshrl.u32 %v1512, 7
    %v1514 = vsub.s32 1, %v1513
    %v1515 = vrot.slane %v1424, %v1514
    %v1516 = vlaneseq
    %v1517 = vshrl.u32 %v1516, 7
    %v1518 = vsub.s32 2, %v1517
    %v1519 = vrot.slane %v1424, %v1518
    %v1523 = vadd.f32 %v1504, %v1511
    %v1524 = vadd.f32 %v1505, %v1515
    %v1525 = vadd.f32 %v1506, %v1519
    %v1526 = vmax.f32 %v1523, 0.0
    %v1527 = vmax.f32 %v1524, 0.0
    %v1528 = vmax.f32 %v1525, 0.0
    %v1529 = vpack.c.bf16 %v1526, %v1526
    %v1530 = vpack.c.bf16 %v1527, %v1527
    %v1531 = vpack.c.bf16 %v1528, %v1528
    %v1532 = vld [vmem:[#allocation7] sm:$0xf]
    %v1533 = vld [vmem:[#allocation7 + $0x4] sm:$0xf]
    %v1534 = vld [vmem:[#allocation7 + $0x8] sm:$0xf]
    %v1535 = vld [vmem:[#allocation7 + $0xc] sm:$0xf]
    %v1536 = vld [vmem:[#allocation7 + $0x10] sm:$0xf]
    %v1537 = vld [vmem:[#allocation7 + $0x14] sm:$0xf]
    %v1538 = vld [vmem:[#allocation7 + $0x18] sm:$0xf]
    %v1539 = vld [vmem:[#allocation7 + $0x1c] sm:$0xf]
    %v1540 = vld [vmem:[#allocation7 + $0x20] sm:$0xf]
    %v1541 = vld [vmem:[#allocation7 + $0x24] sm:$0xf]
    %v1542 = vld [vmem:[#allocation7 + $0x28] sm:$0xf]
    %v1543 = vld [vmem:[#allocation7 + $0x2c] sm:$0xf]
    %v1544 = vld [vmem:[#allocation7 + $0x30] sm:$0xf]
    %v1545 = vld [vmem:[#allocation7 + $0x34] sm:$0xf]
    %v1546 = vld [vmem:[#allocation7 + $0x38] sm:$0xf]
    %v1547 = vld [vmem:[#allocation7 + $0x3c] sm:$0xf]
    %v1548 = vld [vmem:[#allocation7 + $0x40] sm:$0xf]
    %v1549 = vld [vmem:[#allocation7 + $0x44] sm:$0xf]
    %v1550 = vld [vmem:[#allocation7 + $0x48] sm:$0xf]
    %v1551 = vld [vmem:[#allocation7 + $0x4c] sm:$0xf]
    %v1552 = vld [vmem:[#allocation7 + $0x50] sm:$0xf]
    %v1553 = vld [vmem:[#allocation7 + $0x54] sm:$0xf]
    %v1554 = vld [vmem:[#allocation7 + $0x58] sm:$0xf]
    %v1555 = vld [vmem:[#allocation7 + $0x5c] sm:$0xf]
    %v1556 = vld [vmem:[#allocation7 + $0x60] sm:$0xf]
    %v1557 = vld [vmem:[#allocation7 + $0x64] sm:$0xf]
    %v1558 = vld [vmem:[#allocation7 + $0x68] sm:$0xf]
    %v1559 = vld [vmem:[#allocation7 + $0x6c] sm:$0xf]
    %v1560 = vld [vmem:[#allocation7 + $0x70] sm:$0xf]
    %v1561 = vld [vmem:[#allocation7 + $0x74] sm:$0xf]
    %v1562 = vld [vmem:[#allocation7 + $0x78] sm:$0xf]
    %v1563 = vld [vmem:[#allocation7 + $0x7c] sm:$0xf]
    %v1564 = vld [vmem:[#allocation7 + $0x80] sm:$0xf]
    %v1565 = vld [vmem:[#allocation7 + $0x84] sm:$0xf]
    %v1566 = vld [vmem:[#allocation7 + $0x88] sm:$0xf]
    %v1567 = vld [vmem:[#allocation7 + $0x8c] sm:$0xf]
    %v1568 = vld [vmem:[#allocation7 + $0x90] sm:$0xf]
    %v1569 = vld [vmem:[#allocation7 + $0x94] sm:$0xf]
    %v1570 = vld [vmem:[#allocation7 + $0x98] sm:$0xf]
    %v1571 = vld [vmem:[#allocation7 + $0x9c] sm:$0xf]
    %v1572 = vld [vmem:[#allocation7 + $0xa0] sm:$0xf]
    %v1573 = vld [vmem:[#allocation7 + $0xa4] sm:$0xf]
    %v1574 = vld [vmem:[#allocation7 + $0xa8] sm:$0xf]
    %v1575 = vld [vmem:[#allocation7 + $0xac] sm:$0xf]
    %v1576 = vld [vmem:[#allocation7 + $0xb0] sm:$0xf]
    %v1577 = vld [vmem:[#allocation7 + $0xb4] sm:$0xf]
    %v1578 = vld [vmem:[#allocation7 + $0xb8] sm:$0xf]
    %v1579 = vld [vmem:[#allocation7 + $0xbc] sm:$0xf]
    %v1628 = vunpack.c.l.b16 %v1532
    %v1629 = vunpack.c.l.b16 %v1533
    %v1630 = vunpack.c.l.b16 %v1534
    %v1631 = vunpack.c.l.b16 %v1535
    %v1632 = vunpack.c.l.b16 %v1536
    %v1633 = vunpack.c.l.b16 %v1537
    %v1634 = vunpack.c.l.b16 %v1538
    %v1635 = vunpack.c.l.b16 %v1539
    %v1636 = vunpack.c.l.b16 %v1540
    %v1637 = vunpack.c.l.b16 %v1541
    %v1638 = vunpack.c.l.b16 %v1542
    %v1639 = vunpack.c.l.b16 %v1543
    %v1640 = vunpack.c.l.b16 %v1544
    %v1641 = vunpack.c.l.b16 %v1545
    %v1642 = vunpack.c.l.b16 %v1546
    %v1643 = vunpack.c.l.b16 %v1547
    %v1644 = vunpack.c.l.b16 %v1548
    %v1645 = vunpack.c.l.b16 %v1549
    %v1646 = vunpack.c.l.b16 %v1550
    %v1647 = vunpack.c.l.b16 %v1551
    %v1648 = vunpack.c.l.b16 %v1552
    %v1649 = vunpack.c.l.b16 %v1553
    %v1650 = vunpack.c.l.b16 %v1554
    %v1651 = vunpack.c.l.b16 %v1555
    %v1652 = vunpack.c.l.b16 %v1556
    %v1653 = vunpack.c.l.b16 %v1557
    %v1654 = vunpack.c.l.b16 %v1558
    %v1655 = vunpack.c.l.b16 %v1559
    %v1656 = vunpack.c.l.b16 %v1560
    %v1657 = vunpack.c.l.b16 %v1561
    %v1658 = vunpack.c.l.b16 %v1562
    %v1659 = vunpack.c.l.b16 %v1563
    %v1660 = vunpack.c.l.b16 %v1564
    %v1661 = vunpack.c.l.b16 %v1565
    %v1662 = vunpack.c.l.b16 %v1566
    %v1663 = vunpack.c.l.b16 %v1567
    %v1664 = vunpack.c.l.b16 %v1568
    %v1665 = vunpack.c.l.b16 %v1569
    %v1666 = vunpack.c.l.b16 %v1570
    %v1667 = vunpack.c.l.b16 %v1571
    %v1668 = vunpack.c.l.b16 %v1572
    %v1669 = vunpack.c.l.b16 %v1573
    %v1670 = vunpack.c.l.b16 %v1574
    %v1671 = vunpack.c.l.b16 %v1575
    %v1672 = vunpack.c.l.b16 %v1576
    %v1673 = vunpack.c.l.b16 %v1577
    %v1674 = vunpack.c.l.b16 %v1578
    %v1675 = vunpack.c.l.b16 %v1579
    %v1676 = vpack.c.b16 %v1629, %v1628
    %v1677 = vpack.c.b16 %v1631, %v1630
    %v1678 = vpack.c.b16 %v1633, %v1632
    %v1679 = vpack.c.b16 %v1635, %v1634
    %v1680 = vpack.c.b16 %v1637, %v1636
    %v1681 = vpack.c.b16 %v1639, %v1638
    %v1682 = vpack.c.b16 %v1641, %v1640
    %v1683 = vpack.c.b16 %v1643, %v1642
    %v1684 = vpack.c.b16 %v1645, %v1644
    %v1685 = vpack.c.b16 %v1647, %v1646
    %v1686 = vpack.c.b16 %v1649, %v1648
    %v1687 = vpack.c.b16 %v1651, %v1650
    %v1688 = vpack.c.b16 %v1653, %v1652
    %v1689 = vpack.c.b16 %v1655, %v1654
    %v1690 = vpack.c.b16 %v1657, %v1656
    %v1691 = vpack.c.b16 %v1659, %v1658
    %v1692 = vpack.c.b16 %v1661, %v1660
    %v1693 = vpack.c.b16 %v1663, %v1662
    %v1694 = vpack.c.b16 %v1665, %v1664
    %v1695 = vpack.c.b16 %v1667, %v1666
    %v1696 = vpack.c.b16 %v1669, %v1668
    %v1697 = vpack.c.b16 %v1671, %v1670
    %v1698 = vpack.c.b16 %v1673, %v1672
    %v1699 = vpack.c.b16 %v1675, %v1674
    %1724 = vmatprep.subr.bf16.mxu0 0
    %1725 = vmatpush1.bf16.msra.mxu0 %v1676
    %1726 = vmatprep.subr.bf16.mxu0 0
    %1727 = vmatpush1.bf16.msra.mxu0 %v1677
    %1728 = vmatprep.subr.bf16.mxu0 0
    %1729 = vmatpush1.bf16.msra.mxu0 %v1678
    %1730 = vmatprep.subr.bf16.mxu0 0
    %1731 = vmatpush1.bf16.msra.mxu0 %v1679
    %1732 = vmatprep.subr.bf16.mxu0 0
    %1733 = vmatpush1.bf16.msra.mxu0 %v1680
    %1734 = vmatprep.subr.bf16.mxu0 0
    %1735 = vmatpush1.bf16.msra.mxu0 %v1681
    %1736 = vmatprep.subr.bf16.mxu0 0
    %1737 = vmatpush1.bf16.msra.mxu0 %v1682
    %1738 = vmatprep.subr.bf16.mxu0 0
    %1739 = vmatpush1.bf16.msra.mxu0 %v1683
    %1740 = vmatprep.subr.bf16.mxu0 0
    %1741 = vmatpush1.bf16.msra.mxu0 %v1684
    %1742 = vmatprep.subr.bf16.mxu0 0
    %1743 = vmatpush1.bf16.msra.mxu0 %v1685
    %1744 = vmatprep.subr.bf16.mxu0 0
    %1745 = vmatpush1.bf16.msra.mxu0 %v1686
    %1746 = vmatprep.subr.bf16.mxu0 0
    %1747 = vmatpush1.bf16.msra.mxu0 %v1687
    %1748 = vmatprep.subr.bf16.mxu0 0
    %1749 = vmatpush1.bf16.msra.mxu0 %v1688
    %1750 = vmatprep.subr.bf16.mxu0 0
    %1751 = vmatpush1.bf16.msra.mxu0 %v1689
    %1752 = vmatprep.subr.bf16.mxu0 0
    %1753 = vmatpush1.bf16.msra.mxu0 %v1690
    %1754 = vmatprep.subr.bf16.mxu0 0
    %1755 = vmatpush1.bf16.msra.mxu0 %v1691
    %1756 = vmatprep.mubr.bf16.mxu0 %v1530
    %1757 = vmatmul.mubr.bf16.gmra.mrb[0].mxu0 %v1529
    %v1758 = vpop.f32.mrb[0].mxu0
    %v1759 = vadd.f32 0.0, %v1758
    %v1760 = vpop.f32.mrb[0].mxu0
    %v1761 = vpop.f32.mrb[0].mxu0
    %v1762 = vpop.f32.mrb[0].mxu0
    %1763 = vdwg.mxu0
    %1764 = vmatprep.subr.bf16.mxu0 0
    %1765 = vmatpush1.bf16.msra.mxu0 %v1692
    %1766 = vmatprep.subr.bf16.mxu0 0
    %1767 = vmatpush1.bf16.msra.mxu0 %v1693
    %1768 = vmatprep.subr.bf16.mxu0 0
    %1769 = vmatpush1.bf16.msra.mxu0 %v1694
    %1770 = vmatprep.subr.bf16.mxu0 0
    %1771 = vmatpush1.bf16.msra.mxu0 %v1695
    %1772 = vmatprep.subr.bf16.mxu0 0
    %1773 = vmatpush1.bf16.msra.mxu0 %v1696
    %1774 = vmatprep.subr.bf16.mxu0 0
    %1775 = vmatpush1.bf16.msra.mxu0 %v1697
    %1776 = vmatprep.subr.bf16.mxu0 0
    %1777 = vmatpush1.bf16.msra.mxu0 %v1698
    %1778 = vmatprep.subr.bf16.mxu0 0
    %1779 = vmatpush1.bf16.msra.mxu0 %v1699
    %1780 = vmatprep.subr.bf16.mxu0 0
    %1781 = vmatpush1.bf16.msra.mxu0 0
    %1782 = vmatprep.subr.bf16.mxu0 0
    %1783 = vmatpush1.bf16.msra.mxu0 0
    %1784 = vmatprep.subr.bf16.mxu0 0
    %1785 = vmatpush1.bf16.msra.mxu0 0
    %1786 = vmatprep.subr.bf16.mxu0 0
    %1787 = vmatpush1.bf16.msra.mxu0 0
    %1788 = vmatprep.subr.bf16.mxu0 0
    %1789 = vmatpush1.bf16.msra.mxu0 0
    %1790 = vmatprep.subr.bf16.mxu0 0
    %1791 = vmatpush1.bf16.msra.mxu0 0
    %1792 = vmatprep.subr.bf16.mxu0 0
    %1793 = vmatpush1.bf16.msra.mxu0 0
    %1794 = vmatprep.subr.bf16.mxu0 0
    %1795 = vmatpush1.bf16.msra.mxu0 0
    %1796 = vmatprep.mubr.bf16.mxu0 0
    %1797 = vmatmul.mubr.bf16.gmra.mrb[0].mxu0 %v1531
    %v1798 = vpop.f32.mrb[0].mxu0
    %v1799 = vadd.f32 %v1759, %v1798
    %v1800 = vpop.f32.mrb[0].mxu0
    %v1801 = vpop.f32.mrb[0].mxu0
    %v1802 = vpop.f32.mrb[0].mxu0
    %1803 = vdwg.mxu0
    %v1804 = vld [vmem:[%s5] sm:$0x1]
    %v1805 = vld [vmem:[%s6] sm:$0x1]
    %v1806 = vrot.slane %v1799, 4
    %v1807 = vadd.f32 %v1799, %v1806
    %v1808 = vrot.slane %v1807, 2
    %v1809 = vadd.f32 %v1807, %v1808
    %v1810 = vrot.slane %v1809, 1
    %v1811 = vadd.f32 %v1809, %v1810
    %v1812 = vmul.f32 %v1799, %v1799
    %v1813 = vrot.slane %v1812, 4
    %v1814 = vadd.f32 %v1812, %v1813
    %v1815 = vrot.slane %v1814, 2
    %v1816 = vadd.f32 %v1814, %v1815
    %v1817 = vrot.slane %v1816, 1
    %v1818 = vadd.f32 %v1816, %v1817
    %v1819 = vmul.f32 %v1811, 0.125
    %v1820 = vmul.f32 %v1818, 0.125
    %v1821 = vmul.f32 %v1819, %v1819
    %v1822 = vsub.f32 %v1820, %v1821
    %v1823 = vsub.f32 %v1799, %v1819
    %v1824 = vadd.f32 %v1822, 1e-05
    %v1825 = vrsqrt.pop %v1824
    %v1826 = vmul.f32 %v1823, %v1825
    %v1828 = vlaneseq
    %v1829 = vshrl.u32 %v1828, 7
    %v1830 = vsub.s32 0, %v1829
    %v1831 = vrot.slane %v1804, %v1830
    %v1833 = vmul.f32 %v1826, %v1831
    %v1835 = vlaneseq
    %v1836 = vshrl.u32 %v1835, 7
    %v1837 = vsub.s32 0, %v1836
    %v1838 = vrot.slane %v1805, %v1837
    %v1840 = vadd.f32 %v1833, %v1838
    %v1841 = vmax.f32 %v1840, 0.0
    %v1842 = vpack.c.bf16 %v1841, %v1841
    %v1843 = vld [vmem:[#allocation8] sm:$0xf]
    %v1844 = vld [vmem:[#allocation8 + $0x4] sm:$0xf]
    %v1845 = vld [vmem:[#allocation8 + $0x8] sm:$0xf]
    %v1846 = vld [vmem:[#allocation8 + $0xc] sm:$0xf]
    %v1847 = vld [vmem:[#allocation8 + $0x10] sm:$0xf]
    %v1848 = vld [vmem:[#allocation8 + $0x14] sm:$0xf]
    %v1849 = vld [vmem:[#allocation8 + $0x18] sm:$0xf]
    %v1850 = vld [vmem:[#allocation8 + $0x1c] sm:$0xf]
    %v1851 = vld [vmem:[#allocation8 + $0x20] sm:$0xf]
    %v1852 = vld [vmem:[#allocation8 + $0x24] sm:$0xf]
    %v1853 = vld [vmem:[#allocation8 + $0x28] sm:$0xf]
    %v1854 = vld [vmem:[#allocation8 + $0x2c] sm:$0xf]
    %v1855 = vld [vmem:[#allocation8 + $0x30] sm:$0xf]
    %v1856 = vld [vmem:[#allocation8 + $0x34] sm:$0xf]
    %v1857 = vld [vmem:[#allocation8 + $0x38] sm:$0xf]
    %v1858 = vld [vmem:[#allocation8 + $0x3c] sm:$0xf]
    %v1859 = vld [vmem:[%s8] sm:$0x1]
    %v1861 = vlaneseq
    %v1862 = vshrl.u32 %v1861, 7
    %v1863 = vsub.s32 0, %v1862
    %v1864 = vrot.slane %v1859, %v1863
    %v1882 = vunpack.c.l.b16 %v1843
    %v1883 = vunpack.c.l.b16 %v1844
    %v1884 = vunpack.c.l.b16 %v1845
    %v1885 = vunpack.c.l.b16 %v1846
    %v1886 = vunpack.c.l.b16 %v1847
    %v1887 = vunpack.c.l.b16 %v1848
    %v1888 = vunpack.c.l.b16 %v1849
    %v1889 = vunpack.c.l.b16 %v1850
    %v1890 = vunpack.c.l.b16 %v1851
    %v1891 = vunpack.c.l.b16 %v1852
    %v1892 = vunpack.c.l.b16 %v1853
    %v1893 = vunpack.c.l.b16 %v1854
    %v1894 = vunpack.c.l.b16 %v1855
    %v1895 = vunpack.c.l.b16 %v1856
    %v1896 = vunpack.c.l.b16 %v1857
    %v1897 = vunpack.c.l.b16 %v1858
    %v1898 = vpack.c.b16 %v1883, %v1882
    %v1899 = vpack.c.b16 %v1885, %v1884
    %v1900 = vpack.c.b16 %v1887, %v1886
    %v1901 = vpack.c.b16 %v1889, %v1888
    %v1902 = vpack.c.b16 %v1891, %v1890
    %v1903 = vpack.c.b16 %v1893, %v1892
    %v1904 = vpack.c.b16 %v1895, %v1894
    %v1905 = vpack.c.b16 %v1897, %v1896
    %1914 = vmatprep.subr.bf16.mxu0 0
    %1915 = vmatpush1.bf16.msra.mxu0 %v1898
    %1916 = vmatprep.subr.bf16.mxu0 0
    %1917 = vmatpush1.bf16.msra.mxu0 %v1899
    %1918 = vmatprep.subr.bf16.mxu0 0
    %1919 = vmatpush1.bf16.msra.mxu0 %v1900
    %1920 = vmatprep.subr.bf16.mxu0 0
    %1921 = vmatpush1.bf16.msra.mxu0 %v1901
    %1922 = vmatprep.subr.bf16.mxu0 0
    %1923 = vmatpush1.bf16.msra.mxu0 %v1902
    %1924 = vmatprep.subr.bf16.mxu0 0
    %1925 = vmatpush1.bf16.msra.mxu0 %v1903
    %1926 = vmatprep.subr.bf16.mxu0 0
    %1927 = vmatpush1.bf16.msra.mxu0 %v1904
    %1928 = vmatprep.subr.bf16.mxu0 0
    %1929 = vmatpush1.bf16.msra.mxu0 %v1905
    %1930 = vmatprep.subr.bf16.mxu0 0
    %1931 = vmatpush1.bf16.msra.mxu0 0
    %1932 = vmatprep.subr.bf16.mxu0 0
    %1933 = vmatpush1.bf16.msra.mxu0 0
    %1934 = vmatprep.subr.bf16.mxu0 0
    %1935 = vmatpush1.bf16.msra.mxu0 0
    %1936 = vmatprep.subr.bf16.mxu0 0
    %1937 = vmatpush1.bf16.msra.mxu0 0
    %1938 = vmatprep.subr.bf16.mxu0 0
    %1939 = vmatpush1.bf16.msra.mxu0 0
    %1940 = vmatprep.subr.bf16.mxu0 0
    %1941 = vmatpush1.bf16.msra.mxu0 0
    %1942 = vmatprep.subr.bf16.mxu0 0
    %1943 = vmatpush1.bf16.msra.mxu0 0
    %1944 = vmatprep.subr.bf16.mxu0 0
    %1945 = vmatpush1.bf16.msra.mxu0 0
    %1946 = vmatprep.mubr.bf16.mxu0 0
    %1947 = vmatmul.mubr.bf16.gmra.mrb[0].mxu0 %v1842
    %v1948 = vpop.f32.mrb[0].mxu0
    %v1949 = vadd.f32 %v1864, %v1948
    %v1950 = vpop.f32.mrb[0].mxu0
    %v1951 = vpop.f32.mrb[0].mxu0
    %v1952 = vpop.f32.mrb[0].mxu0
    %1953 = vdwg.mxu0
    %1954 = vst [vmem:[#allocation10] sm:$0xff] %v1949
    // Predicated region
    $region54: #{tpu_custom_call.1} parent=1 // pred_check
      _
    $region55: #{tpu_custom_call.1} parent=1 // pred_check_branch
      %1956 = sbr.rel (0) target = $region57
    $region56: #{tpu_custom_call.1} parent=1 // pred_region
      %s1958 = ssub.s32 128, 128
      %1959 = vsyncadd [#allocation4], %s1958
      %s1961 = sshll.u32 [#allocation10], 4
      %s1962 = int_to_ptr.vmem [resolvable:$true] %s1961
      %1964 = dma.vmem_to_hbm [thread:$0]  %s1962, 128, %s9, [#allocation4]
    $region57: #{tpu_custom_call.1} parent=1 // pred_fallthru
      _
    // Predicated region
    $region58: #{tpu_custom_call.1} parent=1 // pred_check
      _
    $region59: #{tpu_custom_call.1} parent=1 // pred_check_branch
      %1966 = sbr.rel (0) target = $region61
    $region60: #{tpu_custom_call.1} parent=1 // pred_region
      %1967 = dma.done [#allocation4], 128
    $region61: #{tpu_custom_call.1} parent=1 // pred_fallthru
      _
    %1968 = vsyncpa [#allocation3], 1
    %1969 = vsyncpa [#allocation6], 1
    %1970 = vsyncpa [#allocation9], 1
    %1971 = vsyncpa [#allocation4], 1

</llo_original>
